<compile_context>
chip_gen: v7x
topology: tpu7x:2x2x1
jax: 0.10.0
libtpu: 0.0.40
codegen_flags: <defaults>
</compile_context>

<pallas_src>
import jax
import jax.numpy as jnp
from jax.experimental import pallas as pl
from jax.experimental.pallas import tpu as pltpu


def _round_up(n, m):
    return ((n + m - 1) // m) * m


def beta_vae_kernel(
    x_ref, eps_ref,
    w1_ref, b1_ref, w2_ref, b2_ref,
    whead_ref, bhead_ref,
    wd1_ref, bd1_ref, wd2_ref, bd2_ref, wd3_ref, bd3_ref,
    recon_ref, mulv_ref,
):
    """One batch tile: encoder -> fused mu/logvar head -> reparam -> decoder."""

    def linear(a, w_ref, b_ref):
        # bf16 operands on the MXU, f32 accumulation, f32 bias add.
        return (
            jnp.dot(a.astype(jnp.bfloat16), w_ref[...],
                    preferred_element_type=jnp.float32)
            + b_ref[...]
        )

    x = x_ref[...]

    # ---- encoder: Linear(input, 512) -> ReLU -> Linear(512, 256) -> ReLU
    h = jnp.maximum(linear(x, w1_ref, b1_ref), 0.0)
    h = jnp.maximum(linear(h, w2_ref, b2_ref), 0.0)

    # ---- fused heads: head = [mu_pad | logvar_pad], each Lp lanes wide
    head = linear(h, whead_ref, bhead_ref)          # (TB, 2*Lp)
    lp = head.shape[-1] // 2
    mu_p = head[:, :lp]
    logvar_p = head[:, lp:]

    # ---- reparameterize: z = mu + eps * exp(0.5 * logvar)
    # Padded latent lanes stay exactly 0 (mu=0, logvar=0 -> std=1, eps=0).
    z = mu_p + eps_ref[...] * jnp.exp(0.5 * logvar_p)

    # ---- decoder: Linear(Lp, 256) -> ReLU -> Linear(256, 512) -> ReLU
    #               -> Linear(512, input) -> Sigmoid
    d = jnp.maximum(linear(z, wd1_ref, bd1_ref), 0.0)
    d = jnp.maximum(linear(d, wd2_ref, bd2_ref), 0.0)
    recon = jax.nn.sigmoid(linear(d, wd3_ref, bd3_ref))   # logistic -> EUP exp

    recon_ref[...] = recon.astype(recon_ref.dtype)
    mulv_ref[...] = head.astype(mulv_ref.dtype)


def pack_params(params, latent_dim):
    """Fuse mu/logvar heads, zero-pad latent to 128 lanes, cast weights bf16."""
    lp = _round_up(latent_dim, 128)

    def pad_cols(a):
        return jnp.pad(a, ((0, 0), (0, lp - a.shape[1])))

    whead = jnp.concatenate([pad_cols(params["wmu"]), pad_cols(params["wlv"])], axis=1)
    bhead = jnp.concatenate([pad_cols(params["bmu"]), pad_cols(params["blv"])], axis=1)
    wd1 = jnp.pad(params["wd1"], ((0, lp - params["wd1"].shape[0]), (0, 0)))

    bf16 = jnp.bfloat16
    packed = dict(
        w1=params["w1"].astype(bf16), b1=params["b1"],
        w2=params["w2"].astype(bf16), b2=params["b2"],
        whead=whead.astype(bf16), bhead=bhead,
        wd1=wd1.astype(bf16), bd1=params["bd1"],
        wd2=params["wd2"].astype(bf16), bd2=params["bd2"],
        wd3=params["wd3"].astype(bf16), bd3=params["bd3"],
    )
    return packed, lp


def beta_vae_forward(x, eps, packed, latent_dim, lat_pad, batch_tile=256):
    """Full BetaVAE forward in one batch-tiled Pallas kernel.

    Returns (recon_x, mu, logvar) with the original (unpadded) shapes.
    batch_tile=256 suits v6e/v7x; 128 is enough on v5e (4x128 MXU).
    """
    B, input_dim = x.shape
    lp = lat_pad

    # Pad eps to Lp lanes; pad batch to a multiple of the tile size.
    eps_p = jnp.pad(eps, ((0, 0), (0, lp - eps.shape[1])))
    bp = _round_up(B, 8)
    tb = batch_tile if bp > batch_tile else bp
    bp = _round_up(B, tb)
    if bp != B:
        x = jnp.pad(x, ((0, bp - B), (0, 0)))
        eps_p = jnp.pad(eps_p, ((0, bp - B), (0, 0)))

    grid = (bp // tb,)

    def batch_spec(ncols):
        return pl.BlockSpec((tb, ncols), lambda i: (i, 0))

    def resident_spec(arr):
        # Constant block index -> fetched once, stays VMEM-resident across tiles.
        return pl.BlockSpec(arr.shape, lambda i: (0, 0))

    weight_keys = ("w1", "b1", "w2", "b2", "whead", "bhead",
                   "wd1", "bd1", "wd2", "bd2", "wd3", "bd3")
    weights = [packed[k] for k in weight_keys]

    recon_p, mulv_p = pl.pallas_call(
        beta_vae_kernel,
        grid=grid,
        in_specs=[batch_spec(input_dim), batch_spec(lp)]
                 + [resident_spec(w) for w in weights],
        out_specs=(batch_spec(input_dim), batch_spec(2 * lp)),
        out_shape=(
            jax.ShapeDtypeStruct((bp, input_dim), jnp.float32),   # recon_x
            jax.ShapeDtypeStruct((bp, 2 * lp), jnp.float32),      # [mu|logvar] padded
        ),
        compiler_params=pltpu.CompilerParams(
            dimension_semantics=("parallel",),   # shards batch tiles across v7x TCs
        ),
    )(x, eps_p, *weights)

    recon = recon_p[:B]
    mu = mulv_p[:B, :latent_dim]
    logvar = mulv_p[:B, lp:lp + latent_dim]
    return recon, mu, logvar


def init_params(key, input_dim, latent_dim):
    """Deterministic synthetic parameters; PyTorch's (out,in) kept as (in,out)."""
    dims = [
        ("w1", (input_dim, 512)), ("b1", (1, 512)),
        ("w2", (512, 256)),       ("b2", (1, 256)),
        ("wmu", (256, latent_dim)), ("bmu", (1, latent_dim)),
        ("wlv", (256, latent_dim)), ("blv", (1, latent_dim)),
        ("wd1", (latent_dim, 256)), ("bd1", (1, 256)),
        ("wd2", (256, 512)),        ("bd2", (1, 512)),
        ("wd3", (512, input_dim)),  ("bd3", (1, input_dim)),
    ]
    params = {}
    keys = jax.random.split(key, len(dims))
    for (name, shape), k in zip(dims, keys):
        fan_in = shape[0] if name.startswith("w") else shape[1]
        scale = 1.0 / jnp.sqrt(jnp.float32(fan_in))
        params[name] = jax.random.normal(k, shape, jnp.float32) * scale
    return params


def reference_forward(x, eps, params):
    """Pure-JAX reference with matching numerics (bf16 weights, f32 accum)."""
    bf16 = jnp.bfloat16

    def linear(a, w, b):
        return jnp.dot(a.astype(bf16), w.astype(bf16),
                       preferred_element_type=jnp.float32) + b

    h = jnp.maximum(linear(x, params["w1"], params["b1"]), 0.0)
    h = jnp.maximum(linear(h, params["w2"], params["b2"]), 0.0)
    mu = linear(h, params["wmu"], params["bmu"])
    logvar = linear(h, params["wlv"], params["blv"])
    z = mu + eps * jnp.exp(0.5 * logvar)
    d = jnp.maximum(linear(z, params["wd1"], params["bd1"]), 0.0)
    d = jnp.maximum(linear(d, params["wd2"], params["bd2"]), 0.0)
    recon = jax.nn.sigmoid(linear(d, params["wd3"], params["bd3"]))
    return recon, mu, logvar


# TODO(synk): loss_function (sum-MSE + beta*KL) is training-time only and not
# part of the module's forward(); not implemented as a kernel.

if __name__ == "__main__":
    B = 8
    INPUT_DIM = 128
    LATENT_DIM = 32

    root = jax.random.PRNGKey(0)
    k_params, k_x, k_eps = jax.random.split(root, 3)

    params = init_params(k_params, INPUT_DIM, LATENT_DIM)
    x = jax.random.uniform(k_x, (B, INPUT_DIM), jnp.float32)
    eps = jax.random.normal(k_eps, (B, LATENT_DIM), jnp.float32)

    packed, lat_pad = pack_params(params, LATENT_DIM)
    recon_x, mu, logvar = beta_vae_forward(x, eps, packed, LATENT_DIM, lat_pad)
    jax.block_until_ready((recon_x, mu, logvar))

    # correctness check against a pure-JAX reference with the same numerics
    r_ref, mu_ref, lv_ref = reference_forward(x, eps, params)
    assert recon_x.shape == (B, INPUT_DIM)
    assert mu.shape == (B, LATENT_DIM) and logvar.shape == (B, LATENT_DIM)
    assert jnp.allclose(recon_x, r_ref, atol=5e-3, rtol=5e-3)
    assert jnp.allclose(mu, mu_ref, atol=5e-3, rtol=5e-3)
    assert jnp.allclose(logvar, lv_ref, atol=5e-3, rtol=5e-3)

    print("KERNEL_OK")
</pallas_src>

<mosaic_0001>
module attributes {stable_mosaic.version = 11 : i64} {
  func.func @beta_vae_kernel(%arg0: i32, %arg1: memref<8x128xf32, #tpu.memory_space<vmem>>, %arg2: memref<8x128xf32, #tpu.memory_space<vmem>>, %arg3: memref<128x512xbf16, #tpu.memory_space<vmem>>, %arg4: memref<1x512xf32, #tpu.memory_space<vmem>>, %arg5: memref<512x256xbf16, #tpu.memory_space<vmem>>, %arg6: memref<1x256xf32, #tpu.memory_space<vmem>>, %arg7: memref<256x256xbf16, #tpu.memory_space<vmem>>, %arg8: memref<1x256xf32, #tpu.memory_space<vmem>>, %arg9: memref<128x256xbf16, #tpu.memory_space<vmem>>, %arg10: memref<1x256xf32, #tpu.memory_space<vmem>>, %arg11: memref<256x512xbf16, #tpu.memory_space<vmem>>, %arg12: memref<1x512xf32, #tpu.memory_space<vmem>>, %arg13: memref<512x128xbf16, #tpu.memory_space<vmem>>, %arg14: memref<1x128xf32, #tpu.memory_space<vmem>>, %arg15: memref<8x128xf32, #tpu.memory_space<vmem>>, %arg16: memref<8x256xf32, #tpu.memory_space<vmem>>) attributes {dimension_semantics = [#tpu.dimension_semantics<parallel>], iteration_bounds = array<i64: 1>, scalar_prefetch = 0 : i64, scratch_operands = 0 : i64, tpu.core_type = #tpu.core_type<tc>, window_params = [{transform_indices = @transform_0, window_bounds = array<i64: 8, 128>}, {transform_indices = @transform_1, window_bounds = array<i64: 8, 128>}, {pipeline_mode = #tpu.pipeline_mode<synchronous>, transform_indices = @transform_2, window_bounds = array<i64: 128, 512>}, {pipeline_mode = #tpu.pipeline_mode<synchronous>, transform_indices = @transform_3, window_bounds = array<i64: 1, 512>}, {pipeline_mode = #tpu.pipeline_mode<synchronous>, transform_indices = @transform_4, window_bounds = array<i64: 512, 256>}, {pipeline_mode = #tpu.pipeline_mode<synchronous>, transform_indices = @transform_5, window_bounds = array<i64: 1, 256>}, {pipeline_mode = #tpu.pipeline_mode<synchronous>, transform_indices = @transform_6, window_bounds = array<i64: 256, 256>}, {pipeline_mode = #tpu.pipeline_mode<synchronous>, transform_indices = @transform_7, window_bounds = array<i64: 1, 256>}, {pipeline_mode = #tpu.pipeline_mode<synchronous>, transform_indices = @transform_8, window_bounds = array<i64: 128, 256>}, {pipeline_mode = #tpu.pipeline_mode<synchronous>, transform_indices = @transform_9, window_bounds = array<i64: 1, 256>}, {pipeline_mode = #tpu.pipeline_mode<synchronous>, transform_indices = @transform_10, window_bounds = array<i64: 256, 512>}, {pipeline_mode = #tpu.pipeline_mode<synchronous>, transform_indices = @transform_11, window_bounds = array<i64: 1, 512>}, {pipeline_mode = #tpu.pipeline_mode<synchronous>, transform_indices = @transform_12, window_bounds = array<i64: 512, 128>}, {pipeline_mode = #tpu.pipeline_mode<synchronous>, transform_indices = @transform_13, window_bounds = array<i64: 1, 128>}, {transform_indices = @transform_14, window_bounds = array<i64: 8, 128>}, {transform_indices = @transform_15, window_bounds = array<i64: 8, 256>}]} {
    %c0 = arith.constant 0 : index
    %c0_0 = arith.constant 0 : index
    %0 = vector.load %arg1[%c0, %c0_0] : memref<8x128xf32, #tpu.memory_space<vmem>>, vector<8x128xf32>
    %1 = arith.truncf %0 : vector<8x128xf32> to vector<8x128xbf16>
    %c0_1 = arith.constant 0 : index
    %c0_2 = arith.constant 0 : index
    %2 = vector.load %arg3[%c0_1, %c0_2] : memref<128x512xbf16, #tpu.memory_space<vmem>>, vector<128x512xbf16>
    %cst = arith.constant dense<0.000000e+00> : vector<8x512xf32>
    %3 = tpu.matmul %1, %2, %cst {dimension_numbers = #tpu.dot_dimension_numbers<[1], [0], [0], [1], [0, 0, 1, 1], [], []>} : vector<8x128xbf16>, vector<128x512xbf16>, vector<8x512xf32> -> vector<8x512xf32>
    %c0_3 = arith.constant 0 : index
    %c0_4 = arith.constant 0 : index
    %4 = vector.load %arg4[%c0_3, %c0_4] : memref<1x512xf32, #tpu.memory_space<vmem>>, vector<1x512xf32>
    %5 = vector.broadcast %4 : vector<1x512xf32> to vector<8x512xf32>
    %6 = arith.addf %3, %5 : vector<8x512xf32>
    %cst_5 = arith.constant 0.000000e+00 : f32
    %7 = vector.broadcast %cst_5 : f32 to vector<8x512xf32>
    %8 = arith.maximumf %6, %7 : vector<8x512xf32>
    %9 = arith.truncf %8 : vector<8x512xf32> to vector<8x512xbf16>
    %c0_6 = arith.constant 0 : index
    %c0_7 = arith.constant 0 : index
    %10 = vector.load %arg5[%c0_6, %c0_7] : memref<512x256xbf16, #tpu.memory_space<vmem>>, vector<512x256xbf16>
    %cst_8 = arith.constant dense<0.000000e+00> : vector<8x256xf32>
    %11 = tpu.matmul %9, %10, %cst_8 {dimension_numbers = #tpu.dot_dimension_numbers<[1], [0], [0], [1], [0, 0, 1, 1], [], []>} : vector<8x512xbf16>, vector<512x256xbf16>, vector<8x256xf32> -> vector<8x256xf32>
    %c0_9 = arith.constant 0 : index
    %c0_10 = arith.constant 0 : index
    %12 = vector.load %arg6[%c0_9, %c0_10] : memref<1x256xf32, #tpu.memory_space<vmem>>, vector<1x256xf32>
    %13 = vector.broadcast %12 : vector<1x256xf32> to vector<8x256xf32>
    %14 = arith.addf %11, %13 : vector<8x256xf32>
    %cst_11 = arith.constant 0.000000e+00 : f32
    %15 = vector.broadcast %cst_11 : f32 to vector<8x256xf32>
    %16 = arith.maximumf %14, %15 : vector<8x256xf32>
    %17 = arith.truncf %16 : vector<8x256xf32> to vector<8x256xbf16>
    %c0_12 = arith.constant 0 : index
    %c0_13 = arith.constant 0 : index
    %18 = vector.load %arg7[%c0_12, %c0_13] : memref<256x256xbf16, #tpu.memory_space<vmem>>, vector<256x256xbf16>
    %cst_14 = arith.constant dense<0.000000e+00> : vector<8x256xf32>
    %19 = tpu.matmul %17, %18, %cst_14 {dimension_numbers = #tpu.dot_dimension_numbers<[1], [0], [0], [1], [0, 0, 1, 1], [], []>} : vector<8x256xbf16>, vector<256x256xbf16>, vector<8x256xf32> -> vector<8x256xf32>
    %c0_15 = arith.constant 0 : index
    %c0_16 = arith.constant 0 : index
    %20 = vector.load %arg8[%c0_15, %c0_16] : memref<1x256xf32, #tpu.memory_space<vmem>>, vector<1x256xf32>
    %21 = vector.broadcast %20 : vector<1x256xf32> to vector<8x256xf32>
    %22 = arith.addf %19, %21 : vector<8x256xf32>
    %23 = vector.extract_strided_slice %22 {offsets = [0, 0], sizes = [8, 128], strides = [1, 1]} : vector<8x256xf32> to vector<8x128xf32>
    %24 = vector.extract_strided_slice %22 {offsets = [0, 128], sizes = [8, 128], strides = [1, 1]} : vector<8x256xf32> to vector<8x128xf32>
    %c0_17 = arith.constant 0 : index
    %c0_18 = arith.constant 0 : index
    %25 = vector.load %arg2[%c0_17, %c0_18] : memref<8x128xf32, #tpu.memory_space<vmem>>, vector<8x128xf32>
    %cst_19 = arith.constant 5.000000e-01 : f32
    %26 = vector.broadcast %cst_19 : f32 to vector<8x128xf32>
    %27 = arith.mulf %26, %24 : vector<8x128xf32>
    %28 = math.exp %27 : vector<8x128xf32>
    %29 = arith.mulf %25, %28 : vector<8x128xf32>
    %30 = arith.addf %23, %29 : vector<8x128xf32>
    %31 = arith.truncf %30 : vector<8x128xf32> to vector<8x128xbf16>
    %c0_20 = arith.constant 0 : index
    %c0_21 = arith.constant 0 : index
    %32 = vector.load %arg9[%c0_20, %c0_21] : memref<128x256xbf16, #tpu.memory_space<vmem>>, vector<128x256xbf16>
    %cst_22 = arith.constant dense<0.000000e+00> : vector<8x256xf32>
    %33 = tpu.matmul %31, %32, %cst_22 {dimension_numbers = #tpu.dot_dimension_numbers<[1], [0], [0], [1], [0, 0, 1, 1], [], []>} : vector<8x128xbf16>, vector<128x256xbf16>, vector<8x256xf32> -> vector<8x256xf32>
    %c0_23 = arith.constant 0 : index
    %c0_24 = arith.constant 0 : index
    %34 = vector.load %arg10[%c0_23, %c0_24] : memref<1x256xf32, #tpu.memory_space<vmem>>, vector<1x256xf32>
    %35 = vector.broadcast %34 : vector<1x256xf32> to vector<8x256xf32>
    %36 = arith.addf %33, %35 : vector<8x256xf32>
    %cst_25 = arith.constant 0.000000e+00 : f32
    %37 = vector.broadcast %cst_25 : f32 to vector<8x256xf32>
    %38 = arith.maximumf %36, %37 : vector<8x256xf32>
    %39 = arith.truncf %38 : vector<8x256xf32> to vector<8x256xbf16>
    %c0_26 = arith.constant 0 : index
    %c0_27 = arith.constant 0 : index
    %40 = vector.load %arg11[%c0_26, %c0_27] : memref<256x512xbf16, #tpu.memory_space<vmem>>, vector<256x512xbf16>
    %cst_28 = arith.constant dense<0.000000e+00> : vector<8x512xf32>
    %41 = tpu.matmul %39, %40, %cst_28 {dimension_numbers = #tpu.dot_dimension_numbers<[1], [0], [0], [1], [0, 0, 1, 1], [], []>} : vector<8x256xbf16>, vector<256x512xbf16>, vector<8x512xf32> -> vector<8x512xf32>
    %c0_29 = arith.constant 0 : index
    %c0_30 = arith.constant 0 : index
    %42 = vector.load %arg12[%c0_29, %c0_30] : memref<1x512xf32, #tpu.memory_space<vmem>>, vector<1x512xf32>
    %43 = vector.broadcast %42 : vector<1x512xf32> to vector<8x512xf32>
    %44 = arith.addf %41, %43 : vector<8x512xf32>
    %cst_31 = arith.constant 0.000000e+00 : f32
    %45 = vector.broadcast %cst_31 : f32 to vector<8x512xf32>
    %46 = arith.maximumf %44, %45 : vector<8x512xf32>
    %47 = arith.truncf %46 : vector<8x512xf32> to vector<8x512xbf16>
    %c0_32 = arith.constant 0 : index
    %c0_33 = arith.constant 0 : index
    %48 = vector.load %arg13[%c0_32, %c0_33] : memref<512x128xbf16, #tpu.memory_space<vmem>>, vector<512x128xbf16>
    %cst_34 = arith.constant dense<0.000000e+00> : vector<8x128xf32>
    %49 = tpu.matmul %47, %48, %cst_34 {dimension_numbers = #tpu.dot_dimension_numbers<[1], [0], [0], [1], [0, 0, 1, 1], [], []>} : vector<8x512xbf16>, vector<512x128xbf16>, vector<8x128xf32> -> vector<8x128xf32>
    %c0_35 = arith.constant 0 : index
    %c0_36 = arith.constant 0 : index
    %50 = vector.load %arg14[%c0_35, %c0_36] : memref<1x128xf32, #tpu.memory_space<vmem>>, vector<1x128xf32>
    %51 = vector.broadcast %50 : vector<1x128xf32> to vector<8x128xf32>
    %52 = arith.addf %49, %51 : vector<8x128xf32>
    %53 = arith.negf %52 : vector<8x128xf32>
    %54 = math.exp %53 : vector<8x128xf32>
    %cst_37 = arith.constant 1.000000e+00 : f32
    %55 = vector.broadcast %cst_37 : f32 to vector<8x128xf32>
    %56 = arith.addf %55, %54 : vector<8x128xf32>
    %57 = arith.divf %55, %56 : vector<8x128xf32>
    %c0_38 = arith.constant 0 : index
    %c0_39 = arith.constant 0 : index
    %58 = vector.load %arg15[%c0_38, %c0_39] : memref<8x128xf32, #tpu.memory_space<vmem>>, vector<8x128xf32>
    tpu.vector_store %arg15[%c0_38, %c0_39], %57 {strides = array<i32>} : memref<8x128xf32, #tpu.memory_space<vmem>>, vector<8x128xf32>,
    %c0_40 = arith.constant 0 : index
    %c0_41 = arith.constant 0 : index
    %59 = vector.load %arg16[%c0_40, %c0_41] : memref<8x256xf32, #tpu.memory_space<vmem>>, vector<8x256xf32>
    tpu.vector_store %arg16[%c0_40, %c0_41], %22 {strides = array<i32>} : memref<8x256xf32, #tpu.memory_space<vmem>>, vector<8x256xf32>,
    return
  }
  func.func @transform_0(%arg0: i32) -> (i32, i32) {
    %c0_i32 = arith.constant 0 : i32
    %c0_i32_0 = arith.constant 0 : i32
    return %arg0, %c0_i32 : i32, i32
  }
  func.func @transform_1(%arg0: i32) -> (i32, i32) {
    %c0_i32 = arith.constant 0 : i32
    %c0_i32_0 = arith.constant 0 : i32
    return %arg0, %c0_i32 : i32, i32
  }
  func.func @transform_2(%arg0: i32) -> (i32, i32) {
    %c0_i32 = arith.constant 0 : i32
    %c0_i32_0 = arith.constant 0 : i32
    %c0_i32_1 = arith.constant 0 : i32
    return %c0_i32, %c0_i32_0 : i32, i32
  }
  func.func @transform_3(%arg0: i32) -> (i32, i32) {
    %c0_i32 = arith.constant 0 : i32
    %c0_i32_0 = arith.constant 0 : i32
    %c0_i32_1 = arith.constant 0 : i32
    return %c0_i32, %c0_i32_0 : i32, i32
  }
  func.func @transform_4(%arg0: i32) -> (i32, i32) {
    %c0_i32 = arith.constant 0 : i32
    %c0_i32_0 = arith.constant 0 : i32
    %c0_i32_1 = arith.constant 0 : i32
    return %c0_i32, %c0_i32_0 : i32, i32
  }
  func.func @transform_5(%arg0: i32) -> (i32, i32) {
    %c0_i32 = arith.constant 0 : i32
    %c0_i32_0 = arith.constant 0 : i32
    %c0_i32_1 = arith.constant 0 : i32
    return %c0_i32, %c0_i32_0 : i32, i32
  }
  func.func @transform_6(%arg0: i32) -> (i32, i32) {
    %c0_i32 = arith.constant 0 : i32
    %c0_i32_0 = arith.constant 0 : i32
    %c0_i32_1 = arith.constant 0 : i32
    return %c0_i32, %c0_i32_0 : i32, i32
  }
  func.func @transform_7(%arg0: i32) -> (i32, i32) {
    %c0_i32 = arith.constant 0 : i32
    %c0_i32_0 = arith.constant 0 : i32
    %c0_i32_1 = arith.constant 0 : i32
    return %c0_i32, %c0_i32_0 : i32, i32
  }
  func.func @transform_8(%arg0: i32) -> (i32, i32) {
    %c0_i32 = arith.constant 0 : i32
    %c0_i32_0 = arith.constant 0 : i32
    %c0_i32_1 = arith.constant 0 : i32
    return %c0_i32, %c0_i32_0 : i32, i32
  }
  func.func @transform_9(%arg0: i32) -> (i32, i32) {
    %c0_i32 = arith.constant 0 : i32
    %c0_i32_0 = arith.constant 0 : i32
    %c0_i32_1 = arith.constant 0 : i32
    return %c0_i32, %c0_i32_0 : i32, i32
  }
  func.func @transform_10(%arg0: i32) -> (i32, i32) {
    %c0_i32 = arith.constant 0 : i32
    %c0_i32_0 = arith.constant 0 : i32
    %c0_i32_1 = arith.constant 0 : i32
    return %c0_i32, %c0_i32_0 : i32, i32
  }
  func.func @transform_11(%arg0: i32) -> (i32, i32) {
    %c0_i32 = arith.constant 0 : i32
    %c0_i32_0 = arith.constant 0 : i32
    %c0_i32_1 = arith.constant 0 : i32
    return %c0_i32, %c0_i32_0 : i32, i32
  }
  func.func @transform_12(%arg0: i32) -> (i32, i32) {
    %c0_i32 = arith.constant 0 : i32
    %c0_i32_0 = arith.constant 0 : i32
    %c0_i32_1 = arith.constant 0 : i32
    return %c0_i32, %c0_i32_0 : i32, i32
  }
  func.func @transform_13(%arg0: i32) -> (i32, i32) {
    %c0_i32 = arith.constant 0 : i32
    %c0_i32_0 = arith.constant 0 : i32
    %c0_i32_1 = arith.constant 0 : i32
    return %c0_i32, %c0_i32_0 : i32, i32
  }
  func.func @transform_14(%arg0: i32) -> (i32, i32) {
    %c0_i32 = arith.constant 0 : i32
    %c0_i32_0 = arith.constant 0 : i32
    return %arg0, %c0_i32 : i32, i32
  }
  func.func @transform_15(%arg0: i32) -> (i32, i32) {
    %c0_i32 = arith.constant 0 : i32
    %c0_i32_0 = arith.constant 0 : i32
    return %arg0, %c0_i32 : i32, i32
  }
}

</mosaic_0001>

<llo_original>
// kernel: tpu_custom_call.1
$region0: #{tpu_custom_call.1}
  #allocation0 [shape = 'u32[]', space=smem, size = 0x4, offset = 0x4, fixed_abs, tag = 'smem constant byte address 0x4 - core index']
  #allocation1 [shape = 'u32[144,128]{1,0:T(1,128)}', space=vmem, size = 0x12000, scoped, tag = 'internal scratch']
  %s0 = inlined_call_operand.hbm [shape: f32[8,128], index: 0, kind: input, shape index: {}]
  %s1 = inlined_call_operand.hbm [shape: f32[8,128], index: 1, kind: input, shape index: {}]
  %s2 = inlined_call_operand.hbm [shape: bf16[128,512], index: 2, kind: input, shape index: {}]
  %s3 = inlined_call_operand.vmem [shape: f32[1,512], index: 3, kind: input, shape index: {}]
  %s4 = inlined_call_operand.hbm [shape: bf16[512,256], index: 4, kind: input, shape index: {}]
  %s5 = inlined_call_operand.vmem [shape: f32[1,256], index: 5, kind: input, shape index: {}]
  %s6 = inlined_call_operand.hbm [shape: bf16[256,256], index: 6, kind: input, shape index: {}]
  %s7 = inlined_call_operand.vmem [shape: f32[1,256], index: 7, kind: input, shape index: {}]
  %s8 = inlined_call_operand.hbm [shape: bf16[128,256], index: 8, kind: input, shape index: {}]
  %s9 = inlined_call_operand.vmem [shape: f32[1,256], index: 9, kind: input, shape index: {}]
  %s10 = inlined_call_operand.hbm [shape: bf16[256,512], index: 10, kind: input, shape index: {}]
  %s11 = inlined_call_operand.vmem [shape: f32[1,512], index: 11, kind: input, shape index: {}]
  %s12 = inlined_call_operand.hbm [shape: bf16[512,128], index: 12, kind: input, shape index: {}]
  %s13 = inlined_call_operand.vmem [shape: f32[1,128], index: 13, kind: input, shape index: {}]
  %s14 = inlined_call_operand.hbm [shape: f32[8,128], index: 14, kind: output, shape index: {0}]
  %s15 = inlined_call_operand.hbm [shape: f32[8,256], index: 15, kind: output, shape index: {1}]
  %16 = xla_tuple %s14, %s15
  %s17 = sld [smem:[#allocation0]]
  $region106: #{tpu_custom_call.1} parent=0
    _
  %s19 = ssub.s32 1, %s17
  %s20 = scalar_select 0, %s19, %s17
  $region1: #{tpu_custom_call.1} parent=0
    #allocation2 [shape = 'u8[4096]{0}', space=vmem, size = 0x1000, scoped, tag = 'input window, operand 0, single buffered']
    #allocation3 [shape = 's32[1]{0}', space=sflag, size = 0x4, scoped, tag = 'scoped memory for tpu_custom_call.1']
    #allocation4 [shape = 's32[1]{0}', space=sflag, size = 0x4, scoped, tag = 'scoped memory for tpu_custom_call.1']
    #allocation5 [shape = 'u8[4096]{0}', space=vmem, size = 0x1000, scoped, tag = 'input window, operand 1, single buffered']
    #allocation6 [shape = 's32[1]{0}', space=sflag, size = 0x4, scoped, tag = 'scoped memory for tpu_custom_call.1']
    #allocation7 [shape = 'u8[131072]{0}', space=vmem, size = 0x20000, scoped, tag = 'input window, operand 2, single buffered']
    #allocation8 [shape = 'u8[262144]{0}', space=vmem, size = 0x40000, scoped, tag = 'input window, operand 4, single buffered']
    #allocation9 [shape = 's32[1]{0}', space=sflag, size = 0x4, scoped, tag = 'scoped memory for tpu_custom_call.1']
    #allocation10 [shape = 'u8[131072]{0}', space=vmem, size = 0x20000, scoped, tag = 'input window, operand 6, single buffered']
    #allocation11 [shape = 'u8[65536]{0}', space=vmem, size = 0x10000, scoped, tag = 'input window, operand 8, single buffered']
    #allocation12 [shape = 's32[1]{0}', space=sflag, size = 0x4, scoped, tag = 'scoped memory for tpu_custom_call.1']
    #allocation13 [shape = 'u8[262144]{0}', space=vmem, size = 0x40000, scoped, tag = 'input window, operand 10, single buffered']
    #allocation14 [shape = 'u8[131072]{0}', space=vmem, size = 0x20000, scoped, tag = 'input window, operand 12, single buffered']
    #allocation15 [shape = 's32[1]{0}', space=sflag, size = 0x4, scoped, tag = 'scoped memory for tpu_custom_call.1']
    #allocation16 [shape = 'u8[4096]{0}', space=vmem, size = 0x1000, scoped, tag = 'output window, operand 0, single buffered']
    #allocation17 [shape = 'u8[8192]{0}', space=vmem, size = 0x2000, scoped, tag = 'output window, operand 1, single buffered']
    #allocation18 [shape = 's32[1]{0}', space=sflag, size = 0x4, scoped, tag = 'scoped memory for tpu_custom_call.1']
    %21 = vsyncpa [#allocation3], 0
    %22 = vsyncpa [#allocation6], 0
    %23 = vsyncpa [#allocation9], 0
    %24 = vsyncpa [#allocation12], 0
    %25 = vsyncpa [#allocation15], 0
    %26 = vsyncpa [#allocation4], 0
    %27 = vsyncpa [#allocation18], 0
    // Predicated region
    $region2: #{tpu_custom_call.1} parent=1 // pred_check
      _
    $region3: #{tpu_custom_call.1} parent=1 // pred_check_branch
      %29 = sbr.rel (0) target = $region5
    $region4: #{tpu_custom_call.1} parent=1 // pred_region
      %s31 = ssub.s32 128, 128
      %32 = vsyncadd [#allocation3], %s31
      %s34 = sshll.u32 [#allocation2], 4
      %s35 = int_to_ptr.vmem [resolvable:$true] %s34
      %37 = dma.hbm_to_vmem [thread:$0]  %s0, 128, %s35, [#allocation3]
    $region5: #{tpu_custom_call.1} parent=1 // pred_fallthru
      _
    // Predicated region
    $region6: #{tpu_custom_call.1} parent=1 // pred_check
      _
    $region7: #{tpu_custom_call.1} parent=1 // pred_check_branch
      %39 = sbr.rel (0) target = $region9
    $region8: #{tpu_custom_call.1} parent=1 // pred_region
      %s41 = ssub.s32 128, 128
      %42 = vsyncadd [#allocation6], %s41
      %s44 = sshll.u32 [#allocation5], 4
      %s45 = int_to_ptr.vmem [resolvable:$true] %s44
      %47 = dma.hbm_to_vmem [thread:$0]  %s1, 128, %s45, [#allocation6]
    $region9: #{tpu_custom_call.1} parent=1 // pred_fallthru
      _
    // Predicated region
    $region10: #{tpu_custom_call.1} parent=1 // pred_check
      _
    $region11: #{tpu_custom_call.1} parent=1 // pred_check_branch
      %49 = sbr.rel (0) target = $region13
    $region12: #{tpu_custom_call.1} parent=1 // pred_region
      %s51 = ssub.s32 4096, 4096
      %52 = vsyncadd [#allocation6], %s51
      %s53 = sshll.u32 [#allocation7], 4
      %s54 = int_to_ptr.vmem [resolvable:$true] %s53
      %59 = dma.hbm_to_vmem [thread:$0]  %s2, 4096, %s54, [#allocation6], 256, 256, 16
    $region13: #{tpu_custom_call.1} parent=1 // pred_fallthru
      _
    // Predicated region
    $region14: #{tpu_custom_call.1} parent=1 // pred_check
      _
    $region15: #{tpu_custom_call.1} parent=1 // pred_check_branch
      %61 = sbr.rel (0) target = $region17
    $region16: #{tpu_custom_call.1} parent=1 // pred_region
      _
    $region17: #{tpu_custom_call.1} parent=1 // pred_fallthru
      _
    // Predicated region
    $region18: #{tpu_custom_call.1} parent=1 // pred_check
      _
    $region19: #{tpu_custom_call.1} parent=1 // pred_check_branch
      %63 = sbr.rel (0) target = $region21
    $region20: #{tpu_custom_call.1} parent=1 // pred_region
      %s65 = ssub.s32 8192, 8192
      %66 = vsyncadd [#allocation9], %s65
      %s67 = sshll.u32 [#allocation8], 4
      %s68 = int_to_ptr.vmem [resolvable:$true] %s67
      %73 = dma.hbm_to_vmem [thread:$0]  %s4, 8192, %s68, [#allocation9], 128, 128, 8
    $region21: #{tpu_custom_call.1} parent=1 // pred_fallthru
      _
    // Predicated region
    $region22: #{tpu_custom_call.1} parent=1 // pred_check
      _
    $region23: #{tpu_custom_call.1} parent=1 // pred_check_branch
      %75 = sbr.rel (0) target = $region25
    $region24: #{tpu_custom_call.1} parent=1 // pred_region
      _
    $region25: #{tpu_custom_call.1} parent=1 // pred_fallthru
      _
    // Predicated region
    $region26: #{tpu_custom_call.1} parent=1 // pred_check
      _
    $region27: #{tpu_custom_call.1} parent=1 // pred_check_branch
      %77 = sbr.rel (0) target = $region29
    $region28: #{tpu_custom_call.1} parent=1 // pred_region
      %s79 = ssub.s32 4096, 4096
      %80 = vsyncadd [#allocation9], %s79
      %s81 = sshll.u32 [#allocation10], 4
      %s82 = int_to_ptr.vmem [resolvable:$true] %s81
      %87 = dma.hbm_to_vmem [thread:$0]  %s6, 4096, %s82, [#allocation9], 128, 128, 8
    $region29: #{tpu_custom_call.1} parent=1 // pred_fallthru
      _
    // Predicated region
    $region30: #{tpu_custom_call.1} parent=1 // pred_check
      _
    $region31: #{tpu_custom_call.1} parent=1 // pred_check_branch
      %89 = sbr.rel (0) target = $region33
    $region32: #{tpu_custom_call.1} parent=1 // pred_region
      _
    $region33: #{tpu_custom_call.1} parent=1 // pred_fallthru
      _
    // Predicated region
    $region34: #{tpu_custom_call.1} parent=1 // pred_check
      _
    $region35: #{tpu_custom_call.1} parent=1 // pred_check_branch
      %91 = sbr.rel (0) target = $region37
    $region36: #{tpu_custom_call.1} parent=1 // pred_region
      %s93 = ssub.s32 2048, 2048
      %94 = vsyncadd [#allocation12], %s93
      %s95 = sshll.u32 [#allocation11], 4
      %s96 = int_to_ptr.vmem [resolvable:$true] %s95
      %101 = dma.hbm_to_vmem [thread:$0]  %s8, 2048, %s96, [#allocation12], 128, 128, 8
    $region37: #{tpu_custom_call.1} parent=1 // pred_fallthru
      _
    // Predicated region
    $region38: #{tpu_custom_call.1} parent=1 // pred_check
      _
    $region39: #{tpu_custom_call.1} parent=1 // pred_check_branch
      %103 = sbr.rel (0) target = $region41
    $region40: #{tpu_custom_call.1} parent=1 // pred_region
      _
    $region41: #{tpu_custom_call.1} parent=1 // pred_fallthru
      _
    // Predicated region
    $region42: #{tpu_custom_call.1} parent=1 // pred_check
      _
    $region43: #{tpu_custom_call.1} parent=1 // pred_check_branch
      %105 = sbr.rel (0) target = $region45
    $region44: #{tpu_custom_call.1} parent=1 // pred_region
      %s107 = ssub.s32 8192, 8192
      %108 = vsyncadd [#allocation12], %s107
      %s109 = sshll.u32 [#allocation13], 4
      %s110 = int_to_ptr.vmem [resolvable:$true] %s109
      %115 = dma.hbm_to_vmem [thread:$0]  %s10, 8192, %s110, [#allocation12], 256, 256, 16
    $region45: #{tpu_custom_call.1} parent=1 // pred_fallthru
      _
    // Predicated region
    $region46: #{tpu_custom_call.1} parent=1 // pred_check
      _
    $region47: #{tpu_custom_call.1} parent=1 // pred_check_branch
      %117 = sbr.rel (0) target = $region49
    $region48: #{tpu_custom_call.1} parent=1 // pred_region
      _
    $region49: #{tpu_custom_call.1} parent=1 // pred_fallthru
      _
    // Predicated region
    $region50: #{tpu_custom_call.1} parent=1 // pred_check
      _
    $region51: #{tpu_custom_call.1} parent=1 // pred_check_branch
      %119 = sbr.rel (0) target = $region53
    $region52: #{tpu_custom_call.1} parent=1 // pred_region
      %s121 = ssub.s32 4096, 4096
      %122 = vsyncadd [#allocation15], %s121
      %s123 = sshll.u32 [#allocation14], 4
      %s124 = int_to_ptr.vmem [resolvable:$true] %s123
      %129 = dma.hbm_to_vmem [thread:$0]  %s12, 4096, %s124, [#allocation15], 64, 64, 4
    $region53: #{tpu_custom_call.1} parent=1 // pred_fallthru
      _
    // Predicated region
    $region54: #{tpu_custom_call.1} parent=1 // pred_check
      _
    $region55: #{tpu_custom_call.1} parent=1 // pred_check_branch
      %131 = sbr.rel (0) target = $region57
    $region56: #{tpu_custom_call.1} parent=1 // pred_region
      _
    $region57: #{tpu_custom_call.1} parent=1 // pred_fallthru
      _
    // Predicated region
    $region58: #{tpu_custom_call.1} parent=1 // pred_check
      _
    $region59: #{tpu_custom_call.1} parent=1 // pred_check_branch
      %133 = sbr.rel (0) target = $region61
    $region60: #{tpu_custom_call.1} parent=1 // pred_region
      %134 = dma.done [#allocation3], 128
    $region61: #{tpu_custom_call.1} parent=1 // pred_fallthru
      _
    // Predicated region
    $region62: #{tpu_custom_call.1} parent=1 // pred_check
      _
    $region63: #{tpu_custom_call.1} parent=1 // pred_check_branch
      %136 = sbr.rel (0) target = $region65
    $region64: #{tpu_custom_call.1} parent=1 // pred_region
      %137 = dma.done [#allocation6], 128
    $region65: #{tpu_custom_call.1} parent=1 // pred_fallthru
      _
    // Predicated region
    $region66: #{tpu_custom_call.1} parent=1 // pred_check
      _
    $region67: #{tpu_custom_call.1} parent=1 // pred_check_branch
      %139 = sbr.rel (0) target = $region69
    $region68: #{tpu_custom_call.1} parent=1 // pred_region
      %140 = dma.done [#allocation6], 4096
    $region69: #{tpu_custom_call.1} parent=1 // pred_fallthru
      _
    // Predicated region
    $region70: #{tpu_custom_call.1} parent=1 // pred_check
      _
    $region71: #{tpu_custom_call.1} parent=1 // pred_check_branch
      %142 = sbr.rel (0) target = $region73
    $region72: #{tpu_custom_call.1} parent=1 // pred_region
      %143 = dma.done [#allocation9], 8192
    $region73: #{tpu_custom_call.1} parent=1 // pred_fallthru
      _
    // Predicated region
    $region74: #{tpu_custom_call.1} parent=1 // pred_check
      _
    $region75: #{tpu_custom_call.1} parent=1 // pred_check_branch
      %145 = sbr.rel (0) target = $region77
    $region76: #{tpu_custom_call.1} parent=1 // pred_region
      %146 = dma.done [#allocation9], 4096
    $region77: #{tpu_custom_call.1} parent=1 // pred_fallthru
      _
    // Predicated region
    $region78: #{tpu_custom_call.1} parent=1 // pred_check
      _
    $region79: #{tpu_custom_call.1} parent=1 // pred_check_branch
      %148 = sbr.rel (0) target = $region81
    $region80: #{tpu_custom_call.1} parent=1 // pred_region
      %149 = dma.done [#allocation12], 2048
    $region81: #{tpu_custom_call.1} parent=1 // pred_fallthru
      _
    // Predicated region
    $region82: #{tpu_custom_call.1} parent=1 // pred_check
      _
    $region83: #{tpu_custom_call.1} parent=1 // pred_check_branch
      %151 = sbr.rel (0) target = $region85
    $region84: #{tpu_custom_call.1} parent=1 // pred_region
      %152 = dma.done [#allocation12], 8192
    $region85: #{tpu_custom_call.1} parent=1 // pred_fallthru
      _
    // Predicated region
    $region86: #{tpu_custom_call.1} parent=1 // pred_check
      _
    $region87: #{tpu_custom_call.1} parent=1 // pred_check_branch
      %154 = sbr.rel (0) target = $region89
    $region88: #{tpu_custom_call.1} parent=1 // pred_region
      %155 = dma.done [#allocation15], 4096
    $region89: #{tpu_custom_call.1} parent=1 // pred_fallthru
      _
    %v157 = vld [vmem:[#allocation2] sm:$0xff]
    %v158 = vpack.c.bf16 %v157, %v157
    %v159 = vld [vmem:[#allocation7] sm:$0xff]
    %v160 = vld [vmem:[#allocation7 + $0x8] sm:$0xff]
    %v161 = vld [vmem:[#allocation7 + $0x10] sm:$0xff]
    %v162 = vld [vmem:[#allocation7 + $0x18] sm:$0xff]
    %v163 = vld [vmem:[#allocation7 + $0x20] sm:$0xff]
    %v164 = vld [vmem:[#allocation7 + $0x28] sm:$0xff]
    %v165 = vld [vmem:[#allocation7 + $0x30] sm:$0xff]
    %v166 = vld [vmem:[#allocation7 + $0x38] sm:$0xff]
    %v167 = vld [vmem:[#allocation7 + $0x40] sm:$0xff]
    %v168 = vld [vmem:[#allocation7 + $0x48] sm:$0xff]
    %v169 = vld [vmem:[#allocation7 + $0x50] sm:$0xff]
    %v170 = vld [vmem:[#allocation7 + $0x58] sm:$0xff]
    %v171 = vld [vmem:[#allocation7 + $0x60] sm:$0xff]
    %v172 = vld [vmem:[#allocation7 + $0x68] sm:$0xff]
    %v173 = vld [vmem:[#allocation7 + $0x70] sm:$0xff]
    %v174 = vld [vmem:[#allocation7 + $0x78] sm:$0xff]
    %v175 = vld [vmem:[#allocation7 + $0x80] sm:$0xff]
    %v176 = vld [vmem:[#allocation7 + $0x88] sm:$0xff]
    %v177 = vld [vmem:[#allocation7 + $0x90] sm:$0xff]
    %v178 = vld [vmem:[#allocation7 + $0x98] sm:$0xff]
    %v179 = vld [vmem:[#allocation7 + $0xa0] sm:$0xff]
    %v180 = vld [vmem:[#allocation7 + $0xa8] sm:$0xff]
    %v181 = vld [vmem:[#allocation7 + $0xb0] sm:$0xff]
    %v182 = vld [vmem:[#allocation7 + $0xb8] sm:$0xff]
    %v183 = vld [vmem:[#allocation7 + $0xc0] sm:$0xff]
    %v184 = vld [vmem:[#allocation7 + $0xc8] sm:$0xff]
    %v185 = vld [vmem:[#allocation7 + $0xd0] sm:$0xff]
    %v186 = vld [vmem:[#allocation7 + $0xd8] sm:$0xff]
    %v187 = vld [vmem:[#allocation7 + $0xe0] sm:$0xff]
    %v188 = vld [vmem:[#allocation7 + $0xe8] sm:$0xff]
    %v189 = vld [vmem:[#allocation7 + $0xf0] sm:$0xff]
    %v190 = vld [vmem:[#allocation7 + $0xf8] sm:$0xff]
    %v191 = vld [vmem:[%s3] sm:$0xf]
    %v193 = vlaneseq
    %v194 = vshrl.u32 %v193, 7
    %v195 = vsub.s32 0, %v194
    %v196 = vrot.slane %v191, %v195
    %v197 = vlaneseq
    %v198 = vshrl.u32 %v197, 7
    %v199 = vsub.s32 1, %v198
    %v200 = vrot.slane %v191, %v199
    %v201 = vlaneseq
    %v202 = vshrl.u32 %v201, 7
    %v203 = vsub.s32 2, %v202
    %v204 = vrot.slane %v191, %v203
    %v205 = vlaneseq
    %v206 = vshrl.u32 %v205, 7
    %v207 = vsub.s32 3, %v206
    %v208 = vrot.slane %v191, %v207
    %v245 = vunpack.c.l.b16 %v159
    %v246 = vunpack.c.h.b16 %v159
    %v247 = vunpack.c.l.b16 %v160
    %v248 = vunpack.c.h.b16 %v160
    %v249 = vunpack.c.l.b16 %v161
    %v250 = vunpack.c.h.b16 %v161
    %v251 = vunpack.c.l.b16 %v162
    %v252 = vunpack.c.h.b16 %v162
    %v253 = vunpack.c.l.b16 %v163
    %v254 = vunpack.c.h.b16 %v163
    %v255 = vunpack.c.l.b16 %v164
    %v256 = vunpack.c.h.b16 %v164
    %v257 = vunpack.c.l.b16 %v165
    %v258 = vunpack.c.h.b16 %v165
    %v259 = vunpack.c.l.b16 %v166
    %v260 = vunpack.c.h.b16 %v166
    %v261 = vunpack.c.l.b16 %v167
    %v262 = vunpack.c.h.b16 %v167
    %v263 = vunpack.c.l.b16 %v168
    %v264 = vunpack.c.h.b16 %v168
    %v265 = vunpack.c.l.b16 %v169
    %v266 = vunpack.c.h.b16 %v169
    %v267 = vunpack.c.l.b16 %v170
    %v268 = vunpack.c.h.b16 %v170
    %v269 = vunpack.c.l.b16 %v171
    %v270 = vunpack.c.h.b16 %v171
    %v271 = vunpack.c.l.b16 %v172
    %v272 = vunpack.c.h.b16 %v172
    %v273 = vunpack.c.l.b16 %v173
    %v274 = vunpack.c.h.b16 %v173
    %v275 = vunpack.c.l.b16 %v174
    %v276 = vunpack.c.h.b16 %v174
    %v277 = vunpack.c.l.b16 %v175
    %v278 = vunpack.c.h.b16 %v175
    %v279 = vunpack.c.l.b16 %v176
    %v280 = vunpack.c.h.b16 %v176
    %v281 = vunpack.c.l.b16 %v177
    %v282 = vunpack.c.h.b16 %v177
    %v283 = vunpack.c.l.b16 %v178
    %v284 = vunpack.c.h.b16 %v178
    %v285 = vunpack.c.l.b16 %v179
    %v286 = vunpack.c.h.b16 %v179
    %v287 = vunpack.c.l.b16 %v180
    %v288 = vunpack.c.h.b16 %v180
    %v289 = vunpack.c.l.b16 %v181
    %v290 = vunpack.c.h.b16 %v181
    %v291 = vunpack.c.l.b16 %v182
    %v292 = vunpack.c.h.b16 %v182
    %v293 = vunpack.c.l.b16 %v183
    %v294 = vunpack.c.h.b16 %v183
    %v295 = vunpack.c.l.b16 %v184
    %v296 = vunpack.c.h.b16 %v184
    %v297 = vunpack.c.l.b16 %v185
    %v298 = vunpack.c.h.b16 %v185
    %v299 = vunpack.c.l.b16 %v186
    %v300 = vunpack.c.h.b16 %v186
    %v301 = vunpack.c.l.b16 %v187
    %v302 = vunpack.c.h.b16 %v187
    %v303 = vunpack.c.l.b16 %v188
    %v304 = vunpack.c.h.b16 %v188
    %v305 = vunpack.c.l.b16 %v189
    %v306 = vunpack.c.h.b16 %v189
    %v307 = vunpack.c.l.b16 %v190
    %v308 = vunpack.c.h.b16 %v190
    %v309 = vpack.c.b16 %v249, %v245
    %v310 = vpack.c.b16 %v250, %v246
    %v311 = vpack.c.b16 %v251, %v247
    %v312 = vpack.c.b16 %v252, %v248
    %v313 = vpack.c.b16 %v257, %v253
    %v314 = vpack.c.b16 %v258, %v254
    %v315 = vpack.c.b16 %v259, %v255
    %v316 = vpack.c.b16 %v260, %v256
    %v317 = vpack.c.b16 %v265, %v261
    %v318 = vpack.c.b16 %v266, %v262
    %v319 = vpack.c.b16 %v267, %v263
    %v320 = vpack.c.b16 %v268, %v264
    %v321 = vpack.c.b16 %v273, %v269
    %v322 = vpack.c.b16 %v274, %v270
    %v323 = vpack.c.b16 %v275, %v271
    %v324 = vpack.c.b16 %v276, %v272
    %v325 = vpack.c.b16 %v281, %v277
    %v326 = vpack.c.b16 %v282, %v278
    %v327 = vpack.c.b16 %v283, %v279
    %v328 = vpack.c.b16 %v284, %v280
    %v329 = vpack.c.b16 %v289, %v285
    %v330 = vpack.c.b16 %v290, %v286
    %v331 = vpack.c.b16 %v291, %v287
    %v332 = vpack.c.b16 %v292, %v288
    %v333 = vpack.c.b16 %v297, %v293
    %v334 = vpack.c.b16 %v298, %v294
    %v335 = vpack.c.b16 %v299, %v295
    %v336 = vpack.c.b16 %v300, %v296
    %v337 = vpack.c.b16 %v305, %v301
    %v338 = vpack.c.b16 %v306, %v302
    %v339 = vpack.c.b16 %v307, %v303
    %v340 = vpack.c.b16 %v308, %v304
    %373 = vmatprep.subr.bf16.mxu0 %v310
    %374 = vmatpush1.bf16.msra.mxu0 %v309
    %375 = vmatprep.subr.bf16.mxu0 %v314
    %376 = vmatpush1.bf16.msra.mxu0 %v313
    %377 = vmatprep.subr.bf16.mxu0 %v318
    %378 = vmatpush1.bf16.msra.mxu0 %v317
    %379 = vmatprep.subr.bf16.mxu0 %v322
    %380 = vmatpush1.bf16.msra.mxu0 %v321
    %381 = vmatprep.subr.bf16.mxu0 %v326
    %382 = vmatpush1.bf16.msra.mxu0 %v325
    %383 = vmatprep.subr.bf16.mxu0 %v330
    %384 = vmatpush1.bf16.msra.mxu0 %v329
    %385 = vmatprep.subr.bf16.mxu0 %v334
    %386 = vmatpush1.bf16.msra.mxu0 %v333
    %387 = vmatprep.subr.bf16.mxu0 %v338
    %388 = vmatpush1.bf16.msra.mxu0 %v337
    %389 = vmatprep.subr.bf16.mxu0 0
    %390 = vmatpush1.bf16.msra.mxu0 0
    %391 = vmatprep.subr.bf16.mxu0 0
    %392 = vmatpush1.bf16.msra.mxu0 0
    %393 = vmatprep.subr.bf16.mxu0 0
    %394 = vmatpush1.bf16.msra.mxu0 0
    %395 = vmatprep.subr.bf16.mxu0 0
    %396 = vmatpush1.bf16.msra.mxu0 0
    %397 = vmatprep.subr.bf16.mxu0 0
    %398 = vmatpush1.bf16.msra.mxu0 0
    %399 = vmatprep.subr.bf16.mxu0 0
    %400 = vmatpush1.bf16.msra.mxu0 0
    %401 = vmatprep.subr.bf16.mxu0 0
    %402 = vmatpush1.bf16.msra.mxu0 0
    %403 = vmatprep.subr.bf16.mxu0 0
    %404 = vmatpush1.bf16.msra.mxu0 0
    %405 = vmatprep.mubr.bf16.mxu0 0
    %406 = vmatmul.mubr.bf16.gmra.mrb[0].mxu0 %v158
    %v407 = vpop.f32.mrb[0].mxu0
    %v408 = vadd.f32 %v196, %v407
    %v409 = vpop.f32.mrb[0].mxu0
    %v410 = vadd.f32 %v200, %v409
    %v411 = vpop.f32.mrb[0].mxu0
    %v412 = vpop.f32.mrb[0].mxu0
    %413 = vdwg.mxu0
    %414 = vmatprep.subr.bf16.mxu0 %v312
    %415 = vmatpush1.bf16.msra.mxu0 %v311
    %416 = vmatprep.subr.bf16.mxu0 %v316
    %417 = vmatpush1.bf16.msra.mxu0 %v315
    %418 = vmatprep.subr.bf16.mxu0 %v320
    %419 = vmatpush1.bf16.msra.mxu0 %v319
    %420 = vmatprep.subr.bf16.mxu0 %v324
    %421 = vmatpush1.bf16.msra.mxu0 %v323
    %422 = vmatprep.subr.bf16.mxu0 %v328
    %423 = vmatpush1.bf16.msra.mxu0 %v327
    %424 = vmatprep.subr.bf16.mxu0 %v332
    %425 = vmatpush1.bf16.msra.mxu0 %v331
    %426 = vmatprep.subr.bf16.mxu0 %v336
    %427 = vmatpush1.bf16.msra.mxu0 %v335
    %428 = vmatprep.subr.bf16.mxu0 %v340
    %429 = vmatpush1.bf16.msra.mxu0 %v339
    %430 = vmatprep.subr.bf16.mxu0 0
    %431 = vmatpush1.bf16.msra.mxu0 0
    %432 = vmatprep.subr.bf16.mxu0 0
    %433 = vmatpush1.bf16.msra.mxu0 0
    %434 = vmatprep.subr.bf16.mxu0 0
    %435 = vmatpush1.bf16.msra.mxu0 0
    %436 = vmatprep.subr.bf16.mxu0 0
    %437 = vmatpush1.bf16.msra.mxu0 0
    %438 = vmatprep.subr.bf16.mxu0 0
    %439 = vmatpush1.bf16.msra.mxu0 0
    %440 = vmatprep.subr.bf16.mxu0 0
    %441 = vmatpush1.bf16.msra.mxu0 0
    %442 = vmatprep.subr.bf16.mxu0 0
    %443 = vmatpush1.bf16.msra.mxu0 0
    %444 = vmatprep.subr.bf16.mxu0 0
    %445 = vmatpush1.bf16.msra.mxu0 0
    %446 = vmatprep.mubr.bf16.mxu0 0
    %447 = vmatmul.mubr.bf16.gmra.mrb[0].mxu0 %v158
    %v448 = vpop.f32.mrb[0].mxu0
    %v449 = vadd.f32 %v204, %v448
    %v450 = vpop.f32.mrb[0].mxu0
    %v451 = vadd.f32 %v208, %v450
    %v452 = vpop.f32.mrb[0].mxu0
    %v453 = vpop.f32.mrb[0].mxu0
    %454 = vdwg.mxu0
    %v455 = vmax.f32 %v408, 0.0
    %v456 = vmax.f32 %v410, 0.0
    %v457 = vmax.f32 %v449, 0.0
    %v458 = vmax.f32 %v451, 0.0
    %v459 = vpack.c.bf16 %v455, %v455
    %v460 = vpack.c.bf16 %v456, %v456
    %v461 = vpack.c.bf16 %v457, %v457
    %v462 = vpack.c.bf16 %v458, %v458
    %v463 = vld [vmem:[#allocation8] sm:$0xff]
    %v464 = vld [vmem:[#allocation8 + $0x8] sm:$0xff]
    %v465 = vld [vmem:[#allocation8 + $0x10] sm:$0xff]
    %v466 = vld [vmem:[#allocation8 + $0x18] sm:$0xff]
    %v467 = vld [vmem:[#allocation8 + $0x20] sm:$0xff]
    %v468 = vld [vmem:[#allocation8 + $0x28] sm:$0xff]
    %v469 = vld [vmem:[#allocation8 + $0x30] sm:$0xff]
    %v470 = vld [vmem:[#allocation8 + $0x38] sm:$0xff]
    %v471 = vld [vmem:[#allocation8 + $0x40] sm:$0xff]
    %v472 = vld [vmem:[#allocation8 + $0x48] sm:$0xff]
    %v473 = vld [vmem:[#allocation8 + $0x50] sm:$0xff]
    %v474 = vld [vmem:[#allocation8 + $0x58] sm:$0xff]
    %v475 = vld [vmem:[#allocation8 + $0x60] sm:$0xff]
    %v476 = vld [vmem:[#allocation8 + $0x68] sm:$0xff]
    %v477 = vld [vmem:[#allocation8 + $0x70] sm:$0xff]
    %v478 = vld [vmem:[#allocation8 + $0x78] sm:$0xff]
    %v479 = vld [vmem:[#allocation8 + $0x80] sm:$0xff]
    %v480 = vld [vmem:[#allocation8 + $0x88] sm:$0xff]
    %v481 = vld [vmem:[#allocation8 + $0x90] sm:$0xff]
    %v482 = vld [vmem:[#allocation8 + $0x98] sm:$0xff]
    %v483 = vld [vmem:[#allocation8 + $0xa0] sm:$0xff]
    %v484 = vld [vmem:[#allocation8 + $0xa8] sm:$0xff]
    %v485 = vld [vmem:[#allocation8 + $0xb0] sm:$0xff]
    %v486 = vld [vmem:[#allocation8 + $0xb8] sm:$0xff]
    %v487 = vld [vmem:[#allocation8 + $0xc0] sm:$0xff]
    %v488 = vld [vmem:[#allocation8 + $0xc8] sm:$0xff]
    %v489 = vld [vmem:[#allocation8 + $0xd0] sm:$0xff]
    %v490 = vld [vmem:[#allocation8 + $0xd8] sm:$0xff]
    %v491 = vld [vmem:[#allocation8 + $0xe0] sm:$0xff]
    %v492 = vld [vmem:[#allocation8 + $0xe8] sm:$0xff]
    %v493 = vld [vmem:[#allocation8 + $0xf0] sm:$0xff]
    %v494 = vld [vmem:[#allocation8 + $0xf8] sm:$0xff]
    %v495 = vld [vmem:[#allocation8 + $0x100] sm:$0xff]
    %v496 = vld [vmem:[#allocation8 + $0x108] sm:$0xff]
    %v497 = vld [vmem:[#allocation8 + $0x110] sm:$0xff]
    %v498 = vld [vmem:[#allocation8 + $0x118] sm:$0xff]
    %v499 = vld [vmem:[#allocation8 + $0x120] sm:$0xff]
    %v500 = vld [vmem:[#allocation8 + $0x128] sm:$0xff]
    %v501 = vld [vmem:[#allocation8 + $0x130] sm:$0xff]
    %v502 = vld [vmem:[#allocation8 + $0x138] sm:$0xff]
    %v503 = vld [vmem:[#allocation8 + $0x140] sm:$0xff]
    %v504 = vld [vmem:[#allocation8 + $0x148] sm:$0xff]
    %v505 = vld [vmem:[#allocation8 + $0x150] sm:$0xff]
    %v506 = vld [vmem:[#allocation8 + $0x158] sm:$0xff]
    %v507 = vld [vmem:[#allocation8 + $0x160] sm:$0xff]
    %v508 = vld [vmem:[#allocation8 + $0x168] sm:$0xff]
    %v509 = vld [vmem:[#allocation8 + $0x170] sm:$0xff]
    %v510 = vld [vmem:[#allocation8 + $0x178] sm:$0xff]
    %v511 = vld [vmem:[#allocation8 + $0x180] sm:$0xff]
    %v512 = vld [vmem:[#allocation8 + $0x188] sm:$0xff]
    %v513 = vld [vmem:[#allocation8 + $0x190] sm:$0xff]
    %v514 = vld [vmem:[#allocation8 + $0x198] sm:$0xff]
    %v515 = vld [vmem:[#allocation8 + $0x1a0] sm:$0xff]
    %v516 = vld [vmem:[#allocation8 + $0x1a8] sm:$0xff]
    %v517 = vld [vmem:[#allocation8 + $0x1b0] sm:$0xff]
    %v518 = vld [vmem:[#allocation8 + $0x1b8] sm:$0xff]
    %v519 = vld [vmem:[#allocation8 + $0x1c0] sm:$0xff]
    %v520 = vld [vmem:[#allocation8 + $0x1c8] sm:$0xff]
    %v521 = vld [vmem:[#allocation8 + $0x1d0] sm:$0xff]
    %v522 = vld [vmem:[#allocation8 + $0x1d8] sm:$0xff]
    %v523 = vld [vmem:[#allocation8 + $0x1e0] sm:$0xff]
    %v524 = vld [vmem:[#allocation8 + $0x1e8] sm:$0xff]
    %v525 = vld [vmem:[#allocation8 + $0x1f0] sm:$0xff]
    %v526 = vld [vmem:[#allocation8 + $0x1f8] sm:$0xff]
    %v527 = vld [vmem:[%s5] sm:$0x3]
    %v529 = vlaneseq
    %v530 = vshrl.u32 %v529, 7
    %v531 = vsub.s32 0, %v530
    %v532 = vrot.slane %v527, %v531
    %v533 = vlaneseq
    %v534 = vshrl.u32 %v533, 7
    %v535 = vsub.s32 1, %v534
    %v536 = vrot.slane %v527, %v535
    %v603 = vunpack.c.l.b16 %v463
    %v604 = vunpack.c.h.b16 %v463
    %v605 = vunpack.c.l.b16 %v464
    %v606 = vunpack.c.h.b16 %v464
    %v607 = vunpack.c.l.b16 %v465
    %v608 = vunpack.c.h.b16 %v465
    %v609 = vunpack.c.l.b16 %v466
    %v610 = vunpack.c.h.b16 %v466
    %v611 = vunpack.c.l.b16 %v467
    %v612 = vunpack.c.h.b16 %v467
    %v613 = vunpack.c.l.b16 %v468
    %v614 = vunpack.c.h.b16 %v468
    %v615 = vunpack.c.l.b16 %v469
    %v616 = vunpack.c.h.b16 %v469
    %v617 = vunpack.c.l.b16 %v470
    %v618 = vunpack.c.h.b16 %v470
    %v619 = vunpack.c.l.b16 %v471
    %v620 = vunpack.c.h.b16 %v471
    %v621 = vunpack.c.l.b16 %v472
    %v622 = vunpack.c.h.b16 %v472
    %v623 = vunpack.c.l.b16 %v473
    %v624 = vunpack.c.h.b16 %v473
    %v625 = vunpack.c.l.b16 %v474
    %v626 = vunpack.c.h.b16 %v474
    %v627 = vunpack.c.l.b16 %v475
    %v628 = vunpack.c.h.b16 %v475
    %v629 = vunpack.c.l.b16 %v476
    %v630 = vunpack.c.h.b16 %v476
    %v631 = vunpack.c.l.b16 %v477
    %v632 = vunpack.c.h.b16 %v477
    %v633 = vunpack.c.l.b16 %v478
    %v634 = vunpack.c.h.b16 %v478
    %v635 = vunpack.c.l.b16 %v479
    %v636 = vunpack.c.h.b16 %v479
    %v637 = vunpack.c.l.b16 %v480
    %v638 = vunpack.c.h.b16 %v480
    %v639 = vunpack.c.l.b16 %v481
    %v640 = vunpack.c.h.b16 %v481
    %v641 = vunpack.c.l.b16 %v482
    %v642 = vunpack.c.h.b16 %v482
    %v643 = vunpack.c.l.b16 %v483
    %v644 = vunpack.c.h.b16 %v483
    %v645 = vunpack.c.l.b16 %v484
    %v646 = vunpack.c.h.b16 %v484
    %v647 = vunpack.c.l.b16 %v485
    %v648 = vunpack.c.h.b16 %v485
    %v649 = vunpack.c.l.b16 %v486
    %v650 = vunpack.c.h.b16 %v486
    %v651 = vunpack.c.l.b16 %v487
    %v652 = vunpack.c.h.b16 %v487
    %v653 = vunpack.c.l.b16 %v488
    %v654 = vunpack.c.h.b16 %v488
    %v655 = vunpack.c.l.b16 %v489
    %v656 = vunpack.c.h.b16 %v489
    %v657 = vunpack.c.l.b16 %v490
    %v658 = vunpack.c.h.b16 %v490
    %v659 = vunpack.c.l.b16 %v491
    %v660 = vunpack.c.h.b16 %v491
    %v661 = vunpack.c.l.b16 %v492
    %v662 = vunpack.c.h.b16 %v492
    %v663 = vunpack.c.l.b16 %v493
    %v664 = vunpack.c.h.b16 %v493
    %v665 = vunpack.c.l.b16 %v494
    %v666 = vunpack.c.h.b16 %v494
    %v667 = vunpack.c.l.b16 %v495
    %v668 = vunpack.c.h.b16 %v495
    %v669 = vunpack.c.l.b16 %v496
    %v670 = vunpack.c.h.b16 %v496
    %v671 = vunpack.c.l.b16 %v497
    %v672 = vunpack.c.h.b16 %v497
    %v673 = vunpack.c.l.b16 %v498
    %v674 = vunpack.c.h.b16 %v498
    %v675 = vunpack.c.l.b16 %v499
    %v676 = vunpack.c.h.b16 %v499
    %v677 = vunpack.c.l.b16 %v500
    %v678 = vunpack.c.h.b16 %v500
    %v679 = vunpack.c.l.b16 %v501
    %v680 = vunpack.c.h.b16 %v501
    %v681 = vunpack.c.l.b16 %v502
    %v682 = vunpack.c.h.b16 %v502
    %v683 = vunpack.c.l.b16 %v503
    %v684 = vunpack.c.h.b16 %v503
    %v685 = vunpack.c.l.b16 %v504
    %v686 = vunpack.c.h.b16 %v504
    %v687 = vunpack.c.l.b16 %v505
    %v688 = vunpack.c.h.b16 %v505
    %v689 = vunpack.c.l.b16 %v506
    %v690 = vunpack.c.h.b16 %v506
    %v691 = vunpack.c.l.b16 %v507
    %v692 = vunpack.c.h.b16 %v507
    %v693 = vunpack.c.l.b16 %v508
    %v694 = vunpack.c.h.b16 %v508
    %v695 = vunpack.c.l.b16 %v509
    %v696 = vunpack.c.h.b16 %v509
    %v697 = vunpack.c.l.b16 %v510
    %v698 = vunpack.c.h.b16 %v510
    %v699 = vunpack.c.l.b16 %v511
    %v700 = vunpack.c.h.b16 %v511
    %v701 = vunpack.c.l.b16 %v512
    %v702 = vunpack.c.h.b16 %v512
    %v703 = vunpack.c.l.b16 %v513
    %v704 = vunpack.c.h.b16 %v513
    %v705 = vunpack.c.l.b16 %v514
    %v706 = vunpack.c.h.b16 %v514
    %v707 = vunpack.c.l.b16 %v515
    %v708 = vunpack.c.h.b16 %v515
    %v709 = vunpack.c.l.b16 %v516
    %v710 = vunpack.c.h.b16 %v516
    %v711 = vunpack.c.l.b16 %v517
    %v712 = vunpack.c.h.b16 %v517
    %v713 = vunpack.c.l.b16 %v518
    %v714 = vunpack.c.h.b16 %v518
    %v715 = vunpack.c.l.b16 %v519
    %v716 = vunpack.c.h.b16 %v519
    %v717 = vunpack.c.l.b16 %v520
    %v718 = vunpack.c.h.b16 %v520
    %v719 = vunpack.c.l.b16 %v521
    %v720 = vunpack.c.h.b16 %v521
    %v721 = vunpack.c.l.b16 %v522
    %v722 = vunpack.c.h.b16 %v522
    %v723 = vunpack.c.l.b16 %v523
    %v724 = vunpack.c.h.b16 %v523
    %v725 = vunpack.c.l.b16 %v524
    %v726 = vunpack.c.h.b16 %v524
    %v727 = vunpack.c.l.b16 %v525
    %v728 = vunpack.c.h.b16 %v525
    %v729 = vunpack.c.l.b16 %v526
    %v730 = vunpack.c.h.b16 %v526
    %v731 = vpack.c.b16 %v605, %v603
    %v732 = vpack.c.b16 %v606, %v604
    %v733 = vpack.c.b16 %v609, %v607
    %v734 = vpack.c.b16 %v610, %v608
    %v735 = vpack.c.b16 %v613, %v611
    %v736 = vpack.c.b16 %v614, %v612
    %v737 = vpack.c.b16 %v617, %v615
    %v738 = vpack.c.b16 %v618, %v616
    %v739 = vpack.c.b16 %v621, %v619
    %v740 = vpack.c.b16 %v622, %v620
    %v741 = vpack.c.b16 %v625, %v623
    %v742 = vpack.c.b16 %v626, %v624
    %v743 = vpack.c.b16 %v629, %v627
    %v744 = vpack.c.b16 %v630, %v628
    %v745 = vpack.c.b16 %v633, %v631
    %v746 = vpack.c.b16 %v634, %v632
    %v747 = vpack.c.b16 %v637, %v635
    %v748 = vpack.c.b16 %v638, %v636
    %v749 = vpack.c.b16 %v641, %v639
    %v750 = vpack.c.b16 %v642, %v640
    %v751 = vpack.c.b16 %v645, %v643
    %v752 = vpack.c.b16 %v646, %v644
    %v753 = vpack.c.b16 %v649, %v647
    %v754 = vpack.c.b16 %v650, %v648
    %v755 = vpack.c.b16 %v653, %v651
    %v756 = vpack.c.b16 %v654, %v652
    %v757 = vpack.c.b16 %v657, %v655
    %v758 = vpack.c.b16 %v658, %v656
    %v759 = vpack.c.b16 %v661, %v659
    %v760 = vpack.c.b16 %v662, %v660
    %v761 = vpack.c.b16 %v665, %v663
    %v762 = vpack.c.b16 %v666, %v664
    %v763 = vpack.c.b16 %v669, %v667
    %v764 = vpack.c.b16 %v670, %v668
    %v765 = vpack.c.b16 %v673, %v671
    %v766 = vpack.c.b16 %v674, %v672
    %v767 = vpack.c.b16 %v677, %v675
    %v768 = vpack.c.b16 %v678, %v676
    %v769 = vpack.c.b16 %v681, %v679
    %v770 = vpack.c.b16 %v682, %v680
    %v771 = vpack.c.b16 %v685, %v683
    %v772 = vpack.c.b16 %v686, %v684
    %v773 = vpack.c.b16 %v689, %v687
    %v774 = vpack.c.b16 %v690, %v688
    %v775 = vpack.c.b16 %v693, %v691
    %v776 = vpack.c.b16 %v694, %v692
    %v777 = vpack.c.b16 %v697, %v695
    %v778 = vpack.c.b16 %v698, %v696
    %v779 = vpack.c.b16 %v701, %v699
    %v780 = vpack.c.b16 %v702, %v700
    %v781 = vpack.c.b16 %v705, %v703
    %v782 = vpack.c.b16 %v706, %v704
    %v783 = vpack.c.b16 %v709, %v707
    %v784 = vpack.c.b16 %v710, %v708
    %v785 = vpack.c.b16 %v713, %v711
    %v786 = vpack.c.b16 %v714, %v712
    %v787 = vpack.c.b16 %v717, %v715
    %v788 = vpack.c.b16 %v718, %v716
    %v789 = vpack.c.b16 %v721, %v719
    %v790 = vpack.c.b16 %v722, %v720
    %v791 = vpack.c.b16 %v725, %v723
    %v792 = vpack.c.b16 %v726, %v724
    %v793 = vpack.c.b16 %v729, %v727
    %v794 = vpack.c.b16 %v730, %v728
    %859 = vmatprep.subr.bf16.mxu0 %v732
    %860 = vmatpush1.bf16.msra.mxu0 %v731
    %861 = vmatprep.subr.bf16.mxu0 %v734
    %862 = vmatpush1.bf16.msra.mxu0 %v733
    %863 = vmatprep.subr.bf16.mxu0 %v736
    %864 = vmatpush1.bf16.msra.mxu0 %v735
    %865 = vmatprep.subr.bf16.mxu0 %v738
    %866 = vmatpush1.bf16.msra.mxu0 %v737
    %867 = vmatprep.subr.bf16.mxu0 %v740
    %868 = vmatpush1.bf16.msra.mxu0 %v739
    %869 = vmatprep.subr.bf16.mxu0 %v742
    %870 = vmatpush1.bf16.msra.mxu0 %v741
    %871 = vmatprep.subr.bf16.mxu0 %v744
    %872 = vmatpush1.bf16.msra.mxu0 %v743
    %873 = vmatprep.subr.bf16.mxu0 %v746
    %874 = vmatpush1.bf16.msra.mxu0 %v745
    %875 = vmatprep.subr.bf16.mxu0 %v748
    %876 = vmatpush1.bf16.msra.mxu0 %v747
    %877 = vmatprep.subr.bf16.mxu0 %v750
    %878 = vmatpush1.bf16.msra.mxu0 %v749
    %879 = vmatprep.subr.bf16.mxu0 %v752
    %880 = vmatpush1.bf16.msra.mxu0 %v751
    %881 = vmatprep.subr.bf16.mxu0 %v754
    %882 = vmatpush1.bf16.msra.mxu0 %v753
    %883 = vmatprep.subr.bf16.mxu0 %v756
    %884 = vmatpush1.bf16.msra.mxu0 %v755
    %885 = vmatprep.subr.bf16.mxu0 %v758
    %886 = vmatpush1.bf16.msra.mxu0 %v757
    %887 = vmatprep.subr.bf16.mxu0 %v760
    %888 = vmatpush1.bf16.msra.mxu0 %v759
    %889 = vmatprep.subr.bf16.mxu0 %v762
    %890 = vmatpush1.bf16.msra.mxu0 %v761
    %891 = vmatprep.mubr.bf16.mxu0 %v460
    %892 = vmatmul.mubr.bf16.gmra.mrb[0].mxu0 %v459
    %v893 = vpop.f32.mrb[0].mxu0
    %v894 = vadd.f32 %v532, %v893
    %v895 = vpop.f32.mrb[0].mxu0
    %v896 = vadd.f32 %v536, %v895
    %v897 = vpop.f32.mrb[0].mxu0
    %v898 = vpop.f32.mrb[0].mxu0
    %899 = vdwg.mxu0
    %900 = vmatprep.subr.bf16.mxu0 %v764
    %901 = vmatpush1.bf16.msra.mxu0 %v763
    %902 = vmatprep.subr.bf16.mxu0 %v766
    %903 = vmatpush1.bf16.msra.mxu0 %v765
    %904 = vmatprep.subr.bf16.mxu0 %v768
    %905 = vmatpush1.bf16.msra.mxu0 %v767
    %906 = vmatprep.subr.bf16.mxu0 %v770
    %907 = vmatpush1.bf16.msra.mxu0 %v769
    %908 = vmatprep.subr.bf16.mxu0 %v772
    %909 = vmatpush1.bf16.msra.mxu0 %v771
    %910 = vmatprep.subr.bf16.mxu0 %v774
    %911 = vmatpush1.bf16.msra.mxu0 %v773
    %912 = vmatprep.subr.bf16.mxu0 %v776
    %913 = vmatpush1.bf16.msra.mxu0 %v775
    %914 = vmatprep.subr.bf16.mxu0 %v778
    %915 = vmatpush1.bf16.msra.mxu0 %v777
    %916 = vmatprep.subr.bf16.mxu0 %v780
    %917 = vmatpush1.bf16.msra.mxu0 %v779
    %918 = vmatprep.subr.bf16.mxu0 %v782
    %919 = vmatpush1.bf16.msra.mxu0 %v781
    %920 = vmatprep.subr.bf16.mxu0 %v784
    %921 = vmatpush1.bf16.msra.mxu0 %v783
    %922 = vmatprep.subr.bf16.mxu0 %v786
    %923 = vmatpush1.bf16.msra.mxu0 %v785
    %924 = vmatprep.subr.bf16.mxu0 %v788
    %925 = vmatpush1.bf16.msra.mxu0 %v787
    %926 = vmatprep.subr.bf16.mxu0 %v790
    %927 = vmatpush1.bf16.msra.mxu0 %v789
    %928 = vmatprep.subr.bf16.mxu0 %v792
    %929 = vmatpush1.bf16.msra.mxu0 %v791
    %930 = vmatprep.subr.bf16.mxu0 %v794
    %931 = vmatpush1.bf16.msra.mxu0 %v793
    %932 = vmatprep.mubr.bf16.mxu0 %v462
    %933 = vmatmul.mubr.bf16.gmra.mrb[0].mxu0 %v461
    %v934 = vpop.f32.mrb[0].mxu0
    %v935 = vadd.f32 %v894, %v934
    %v936 = vpop.f32.mrb[0].mxu0
    %v937 = vadd.f32 %v896, %v936
    %v938 = vpop.f32.mrb[0].mxu0
    %v939 = vpop.f32.mrb[0].mxu0
    %940 = vdwg.mxu0
    %v941 = vmax.f32 %v935, 0.0
    %v942 = vmax.f32 %v937, 0.0
    %v943 = vpack.c.bf16 %v941, %v941
    %v944 = vpack.c.bf16 %v942, %v942
    %v945 = vld [vmem:[#allocation10] sm:$0xff]
    %v946 = vld [vmem:[#allocation10 + $0x8] sm:$0xff]
    %v947 = vld [vmem:[#allocation10 + $0x10] sm:$0xff]
    %v948 = vld [vmem:[#allocation10 + $0x18] sm:$0xff]
    %v949 = vld [vmem:[#allocation10 + $0x20] sm:$0xff]
    %v950 = vld [vmem:[#allocation10 + $0x28] sm:$0xff]
    %v951 = vld [vmem:[#allocation10 + $0x30] sm:$0xff]
    %v952 = vld [vmem:[#allocation10 + $0x38] sm:$0xff]
    %v953 = vld [vmem:[#allocation10 + $0x40] sm:$0xff]
    %v954 = vld [vmem:[#allocation10 + $0x48] sm:$0xff]
    %v955 = vld [vmem:[#allocation10 + $0x50] sm:$0xff]
    %v956 = vld [vmem:[#allocation10 + $0x58] sm:$0xff]
    %v957 = vld [vmem:[#allocation10 + $0x60] sm:$0xff]
    %v958 = vld [vmem:[#allocation10 + $0x68] sm:$0xff]
    %v959 = vld [vmem:[#allocation10 + $0x70] sm:$0xff]
    %v960 = vld [vmem:[#allocation10 + $0x78] sm:$0xff]
    %v961 = vld [vmem:[#allocation10 + $0x80] sm:$0xff]
    %v962 = vld [vmem:[#allocation10 + $0x88] sm:$0xff]
    %v963 = vld [vmem:[#allocation10 + $0x90] sm:$0xff]
    %v964 = vld [vmem:[#allocation10 + $0x98] sm:$0xff]
    %v965 = vld [vmem:[#allocation10 + $0xa0] sm:$0xff]
    %v966 = vld [vmem:[#allocation10 + $0xa8] sm:$0xff]
    %v967 = vld [vmem:[#allocation10 + $0xb0] sm:$0xff]
    %v968 = vld [vmem:[#allocation10 + $0xb8] sm:$0xff]
    %v969 = vld [vmem:[#allocation10 + $0xc0] sm:$0xff]
    %v970 = vld [vmem:[#allocation10 + $0xc8] sm:$0xff]
    %v971 = vld [vmem:[#allocation10 + $0xd0] sm:$0xff]
    %v972 = vld [vmem:[#allocation10 + $0xd8] sm:$0xff]
    %v973 = vld [vmem:[#allocation10 + $0xe0] sm:$0xff]
    %v974 = vld [vmem:[#allocation10 + $0xe8] sm:$0xff]
    %v975 = vld [vmem:[#allocation10 + $0xf0] sm:$0xff]
    %v976 = vld [vmem:[#allocation10 + $0xf8] sm:$0xff]
    %v977 = vld [vmem:[%s7] sm:$0x3]
    %v979 = vlaneseq
    %v980 = vshrl.u32 %v979, 7
    %v981 = vsub.s32 0, %v980
    %v982 = vrot.slane %v977, %v981
    %v983 = vlaneseq
    %v984 = vshrl.u32 %v983, 7
    %v985 = vsub.s32 1, %v984
    %v986 = vrot.slane %v977, %v985
    %v1021 = vunpack.c.l.b16 %v945
    %v1022 = vunpack.c.h.b16 %v945
    %v1023 = vunpack.c.l.b16 %v946
    %v1024 = vunpack.c.h.b16 %v946
    %v1025 = vunpack.c.l.b16 %v947
    %v1026 = vunpack.c.h.b16 %v947
    %v1027 = vunpack.c.l.b16 %v948
    %v1028 = vunpack.c.h.b16 %v948
    %v1029 = vunpack.c.l.b16 %v949
    %v1030 = vunpack.c.h.b16 %v949
    %v1031 = vunpack.c.l.b16 %v950
    %v1032 = vunpack.c.h.b16 %v950
    %v1033 = vunpack.c.l.b16 %v951
    %v1034 = vunpack.c.h.b16 %v951
    %v1035 = vunpack.c.l.b16 %v952
    %v1036 = vunpack.c.h.b16 %v952
    %v1037 = vunpack.c.l.b16 %v953
    %v1038 = vunpack.c.h.b16 %v953
    %v1039 = vunpack.c.l.b16 %v954
    %v1040 = vunpack.c.h.b16 %v954
    %v1041 = vunpack.c.l.b16 %v955
    %v1042 = vunpack.c.h.b16 %v955
    %v1043 = vunpack.c.l.b16 %v956
    %v1044 = vunpack.c.h.b16 %v956
    %v1045 = vunpack.c.l.b16 %v957
    %v1046 = vunpack.c.h.b16 %v957
    %v1047 = vunpack.c.l.b16 %v958
    %v1048 = vunpack.c.h.b16 %v958
    %v1049 = vunpack.c.l.b16 %v959
    %v1050 = vunpack.c.h.b16 %v959
    %v1051 = vunpack.c.l.b16 %v960
    %v1052 = vunpack.c.h.b16 %v960
    %v1053 = vunpack.c.l.b16 %v961
    %v1054 = vunpack.c.h.b16 %v961
    %v1055 = vunpack.c.l.b16 %v962
    %v1056 = vunpack.c.h.b16 %v962
    %v1057 = vunpack.c.l.b16 %v963
    %v1058 = vunpack.c.h.b16 %v963
    %v1059 = vunpack.c.l.b16 %v964
    %v1060 = vunpack.c.h.b16 %v964
    %v1061 = vunpack.c.l.b16 %v965
    %v1062 = vunpack.c.h.b16 %v965
    %v1063 = vunpack.c.l.b16 %v966
    %v1064 = vunpack.c.h.b16 %v966
    %v1065 = vunpack.c.l.b16 %v967
    %v1066 = vunpack.c.h.b16 %v967
    %v1067 = vunpack.c.l.b16 %v968
    %v1068 = vunpack.c.h.b16 %v968
    %v1069 = vunpack.c.l.b16 %v969
    %v1070 = vunpack.c.h.b16 %v969
    %v1071 = vunpack.c.l.b16 %v970
    %v1072 = vunpack.c.h.b16 %v970
    %v1073 = vunpack.c.l.b16 %v971
    %v1074 = vunpack.c.h.b16 %v971
    %v1075 = vunpack.c.l.b16 %v972
    %v1076 = vunpack.c.h.b16 %v972
    %v1077 = vunpack.c.l.b16 %v973
    %v1078 = vunpack.c.h.b16 %v973
    %v1079 = vunpack.c.l.b16 %v974
    %v1080 = vunpack.c.h.b16 %v974
    %v1081 = vunpack.c.l.b16 %v975
    %v1082 = vunpack.c.h.b16 %v975
    %v1083 = vunpack.c.l.b16 %v976
    %v1084 = vunpack.c.h.b16 %v976
    %v1085 = vpack.c.b16 %v1023, %v1021
    %v1086 = vpack.c.b16 %v1024, %v1022
    %v1087 = vpack.c.b16 %v1027, %v1025
    %v1088 = vpack.c.b16 %v1028, %v1026
    %v1089 = vpack.c.b16 %v1031, %v1029
    %v1090 = vpack.c.b16 %v1032, %v1030
    %v1091 = vpack.c.b16 %v1035, %v1033
    %v1092 = vpack.c.b16 %v1036, %v1034
    %v1093 = vpack.c.b16 %v1039, %v1037
    %v1094 = vpack.c.b16 %v1040, %v1038
    %v1095 = vpack.c.b16 %v1043, %v1041
    %v1096 = vpack.c.b16 %v1044, %v1042
    %v1097 = vpack.c.b16 %v1047, %v1045
    %v1098 = vpack.c.b16 %v1048, %v1046
    %v1099 = vpack.c.b16 %v1051, %v1049
    %v1100 = vpack.c.b16 %v1052, %v1050
    %v1101 = vpack.c.b16 %v1055, %v1053
    %v1102 = vpack.c.b16 %v1056, %v1054
    %v1103 = vpack.c.b16 %v1059, %v1057
    %v1104 = vpack.c.b16 %v1060, %v1058
    %v1105 = vpack.c.b16 %v1063, %v1061
    %v1106 = vpack.c.b16 %v1064, %v1062
    %v1107 = vpack.c.b16 %v1067, %v1065
    %v1108 = vpack.c.b16 %v1068, %v1066
    %v1109 = vpack.c.b16 %v1071, %v1069
    %v1110 = vpack.c.b16 %v1072, %v1070
    %v1111 = vpack.c.b16 %v1075, %v1073
    %v1112 = vpack.c.b16 %v1076, %v1074
    %v1113 = vpack.c.b16 %v1079, %v1077
    %v1114 = vpack.c.b16 %v1080, %v1078
    %v1115 = vpack.c.b16 %v1083, %v1081
    %v1116 = vpack.c.b16 %v1084, %v1082
    %1149 = vmatprep.subr.bf16.mxu0 %v1086
    %1150 = vmatpush1.bf16.msra.mxu0 %v1085
    %1151 = vmatprep.subr.bf16.mxu0 %v1088
    %1152 = vmatpush1.bf16.msra.mxu0 %v1087
    %1153 = vmatprep.subr.bf16.mxu0 %v1090
    %1154 = vmatpush1.bf16.msra.mxu0 %v1089
    %1155 = vmatprep.subr.bf16.mxu0 %v1092
    %1156 = vmatpush1.bf16.msra.mxu0 %v1091
    %1157 = vmatprep.subr.bf16.mxu0 %v1094
    %1158 = vmatpush1.bf16.msra.mxu0 %v1093
    %1159 = vmatprep.subr.bf16.mxu0 %v1096
    %1160 = vmatpush1.bf16.msra.mxu0 %v1095
    %1161 = vmatprep.subr.bf16.mxu0 %v1098
    %1162 = vmatpush1.bf16.msra.mxu0 %v1097
    %1163 = vmatprep.subr.bf16.mxu0 %v1100
    %1164 = vmatpush1.bf16.msra.mxu0 %v1099
    %1165 = vmatprep.subr.bf16.mxu0 %v1102
    %1166 = vmatpush1.bf16.msra.mxu0 %v1101
    %1167 = vmatprep.subr.bf16.mxu0 %v1104
    %1168 = vmatpush1.bf16.msra.mxu0 %v1103
    %1169 = vmatprep.subr.bf16.mxu0 %v1106
    %1170 = vmatpush1.bf16.msra.mxu0 %v1105
    %1171 = vmatprep.subr.bf16.mxu0 %v1108
    %1172 = vmatpush1.bf16.msra.mxu0 %v1107
    %1173 = vmatprep.subr.bf16.mxu0 %v1110
    %1174 = vmatpush1.bf16.msra.mxu0 %v1109
    %1175 = vmatprep.subr.bf16.mxu0 %v1112
    %1176 = vmatpush1.bf16.msra.mxu0 %v1111
    %1177 = vmatprep.subr.bf16.mxu0 %v1114
    %1178 = vmatpush1.bf16.msra.mxu0 %v1113
    %1179 = vmatprep.subr.bf16.mxu0 %v1116
    %1180 = vmatpush1.bf16.msra.mxu0 %v1115
    %1181 = vmatprep.mubr.bf16.mxu0 %v944
    %1182 = vmatmul.mubr.bf16.gmra.mrb[0].mxu0 %v943
    %v1183 = vpop.f32.mrb[0].mxu0
    %v1184 = vadd.f32 %v982, %v1183
    %v1185 = vpop.f32.mrb[0].mxu0
    %v1186 = vadd.f32 %v986, %v1185
    %v1187 = vpop.f32.mrb[0].mxu0
    %v1188 = vpop.f32.mrb[0].mxu0
    %1189 = vdwg.mxu0
    %v1190 = vld [vmem:[#allocation5] sm:$0xff]
    %v1191 = vmul.f32 %v1186, 0.5
    %v1192 = vmul.f32 %v1191, 1.442695
    %v1193 = vpow.pop %v1192
    %v1194 = vmul.f32 %v1190, %v1193
    %v1195 = vadd.f32 %v1184, %v1194
    %v1196 = vpack.c.bf16 %v1195, %v1195
    %v1197 = vld [vmem:[#allocation11] sm:$0xff]
    %v1198 = vld [vmem:[#allocation11 + $0x8] sm:$0xff]
    %v1199 = vld [vmem:[#allocation11 + $0x10] sm:$0xff]
    %v1200 = vld [vmem:[#allocation11 + $0x18] sm:$0xff]
    %v1201 = vld [vmem:[#allocation11 + $0x20] sm:$0xff]
    %v1202 = vld [vmem:[#allocation11 + $0x28] sm:$0xff]
    %v1203 = vld [vmem:[#allocation11 + $0x30] sm:$0xff]
    %v1204 = vld [vmem:[#allocation11 + $0x38] sm:$0xff]
    %v1205 = vld [vmem:[#allocation11 + $0x40] sm:$0xff]
    %v1206 = vld [vmem:[#allocation11 + $0x48] sm:$0xff]
    %v1207 = vld [vmem:[#allocation11 + $0x50] sm:$0xff]
    %v1208 = vld [vmem:[#allocation11 + $0x58] sm:$0xff]
    %v1209 = vld [vmem:[#allocation11 + $0x60] sm:$0xff]
    %v1210 = vld [vmem:[#allocation11 + $0x68] sm:$0xff]
    %v1211 = vld [vmem:[#allocation11 + $0x70] sm:$0xff]
    %v1212 = vld [vmem:[#allocation11 + $0x78] sm:$0xff]
    %v1213 = vld [vmem:[%s9] sm:$0x3]
    %v1215 = vlaneseq
    %v1216 = vshrl.u32 %v1215, 7
    %v1217 = vsub.s32 0, %v1216
    %v1218 = vrot.slane %v1213, %v1217
    %v1219 = vlaneseq
    %v1220 = vshrl.u32 %v1219, 7
    %v1221 = vsub.s32 1, %v1220
    %v1222 = vrot.slane %v1213, %v1221
    %v1241 = vunpack.c.l.b16 %v1197
    %v1242 = vunpack.c.h.b16 %v1197
    %v1243 = vunpack.c.l.b16 %v1198
    %v1244 = vunpack.c.h.b16 %v1198
    %v1245 = vunpack.c.l.b16 %v1199
    %v1246 = vunpack.c.h.b16 %v1199
    %v1247 = vunpack.c.l.b16 %v1200
    %v1248 = vunpack.c.h.b16 %v1200
    %v1249 = vunpack.c.l.b16 %v1201
    %v1250 = vunpack.c.h.b16 %v1201
    %v1251 = vunpack.c.l.b16 %v1202
    %v1252 = vunpack.c.h.b16 %v1202
    %v1253 = vunpack.c.l.b16 %v1203
    %v1254 = vunpack.c.h.b16 %v1203
    %v1255 = vunpack.c.l.b16 %v1204
    %v1256 = vunpack.c.h.b16 %v1204
    %v1257 = vunpack.c.l.b16 %v1205
    %v1258 = vunpack.c.h.b16 %v1205
    %v1259 = vunpack.c.l.b16 %v1206
    %v1260 = vunpack.c.h.b16 %v1206
    %v1261 = vunpack.c.l.b16 %v1207
    %v1262 = vunpack.c.h.b16 %v1207
    %v1263 = vunpack.c.l.b16 %v1208
    %v1264 = vunpack.c.h.b16 %v1208
    %v1265 = vunpack.c.l.b16 %v1209
    %v1266 = vunpack.c.h.b16 %v1209
    %v1267 = vunpack.c.l.b16 %v1210
    %v1268 = vunpack.c.h.b16 %v1210
    %v1269 = vunpack.c.l.b16 %v1211
    %v1270 = vunpack.c.h.b16 %v1211
    %v1271 = vunpack.c.l.b16 %v1212
    %v1272 = vunpack.c.h.b16 %v1212
    %v1273 = vpack.c.b16 %v1243, %v1241
    %v1274 = vpack.c.b16 %v1244, %v1242
    %v1275 = vpack.c.b16 %v1247, %v1245
    %v1276 = vpack.c.b16 %v1248, %v1246
    %v1277 = vpack.c.b16 %v1251, %v1249
    %v1278 = vpack.c.b16 %v1252, %v1250
    %v1279 = vpack.c.b16 %v1255, %v1253
    %v1280 = vpack.c.b16 %v1256, %v1254
    %v1281 = vpack.c.b16 %v1259, %v1257
    %v1282 = vpack.c.b16 %v1260, %v1258
    %v1283 = vpack.c.b16 %v1263, %v1261
    %v1284 = vpack.c.b16 %v1264, %v1262
    %v1285 = vpack.c.b16 %v1267, %v1265
    %v1286 = vpack.c.b16 %v1268, %v1266
    %v1287 = vpack.c.b16 %v1271, %v1269
    %v1288 = vpack.c.b16 %v1272, %v1270
    %1305 = vmatprep.subr.bf16.mxu0 %v1274
    %1306 = vmatpush1.bf16.msra.mxu0 %v1273
    %1307 = vmatprep.subr.bf16.mxu0 %v1276
    %1308 = vmatpush1.bf16.msra.mxu0 %v1275
    %1309 = vmatprep.subr.bf16.mxu0 %v1278
    %1310 = vmatpush1.bf16.msra.mxu0 %v1277
    %1311 = vmatprep.subr.bf16.mxu0 %v1280
    %1312 = vmatpush1.bf16.msra.mxu0 %v1279
    %1313 = vmatprep.subr.bf16.mxu0 %v1282
    %1314 = vmatpush1.bf16.msra.mxu0 %v1281
    %1315 = vmatprep.subr.bf16.mxu0 %v1284
    %1316 = vmatpush1.bf16.msra.mxu0 %v1283
    %1317 = vmatprep.subr.bf16.mxu0 %v1286
    %1318 = vmatpush1.bf16.msra.mxu0 %v1285
    %1319 = vmatprep.subr.bf16.mxu0 %v1288
    %1320 = vmatpush1.bf16.msra.mxu0 %v1287
    %1321 = vmatprep.subr.bf16.mxu0 0
    %1322 = vmatpush1.bf16.msra.mxu0 0
    %1323 = vmatprep.subr.bf16.mxu0 0
    %1324 = vmatpush1.bf16.msra.mxu0 0
    %1325 = vmatprep.subr.bf16.mxu0 0
    %1326 = vmatpush1.bf16.msra.mxu0 0
    %1327 = vmatprep.subr.bf16.mxu0 0
    %1328 = vmatpush1.bf16.msra.mxu0 0
    %1329 = vmatprep.subr.bf16.mxu0 0
    %1330 = vmatpush1.bf16.msra.mxu0 0
    %1331 = vmatprep.subr.bf16.mxu0 0
    %1332 = vmatpush1.bf16.msra.mxu0 0
    %1333 = vmatprep.subr.bf16.mxu0 0
    %1334 = vmatpush1.bf16.msra.mxu0 0
    %1335 = vmatprep.subr.bf16.mxu0 0
    %1336 = vmatpush1.bf16.msra.mxu0 0
    %1337 = vmatprep.mubr.bf16.mxu0 0
    %1338 = vmatmul.mubr.bf16.gmra.mrb[0].mxu0 %v1196
    %v1339 = vpop.f32.mrb[0].mxu0
    %v1340 = vadd.f32 %v1218, %v1339
    %v1341 = vpop.f32.mrb[0].mxu0
    %v1342 = vadd.f32 %v1222, %v1341
    %v1343 = vpop.f32.mrb[0].mxu0
    %v1344 = vpop.f32.mrb[0].mxu0
    %1345 = vdwg.mxu0
    %v1346 = vmax.f32 %v1340, 0.0
    %v1347 = vmax.f32 %v1342, 0.0
    %v1348 = vpack.c.bf16 %v1346, %v1346
    %v1349 = vpack.c.bf16 %v1347, %v1347
    %v1350 = vld [vmem:[#allocation13] sm:$0xff]
    %v1351 = vld [vmem:[#allocation13 + $0x8] sm:$0xff]
    %v1352 = vld [vmem:[#allocation13 + $0x10] sm:$0xff]
    %v1353 = vld [vmem:[#allocation13 + $0x18] sm:$0xff]
    %v1354 = vld [vmem:[#allocation13 + $0x20] sm:$0xff]
    %v1355 = vld [vmem:[#allocation13 + $0x28] sm:$0xff]
    %v1356 = vld [vmem:[#allocation13 + $0x30] sm:$0xff]
    %v1357 = vld [vmem:[#allocation13 + $0x38] sm:$0xff]
    %v1358 = vld [vmem:[#allocation13 + $0x40] sm:$0xff]
    %v1359 = vld [vmem:[#allocation13 + $0x48] sm:$0xff]
    %v1360 = vld [vmem:[#allocation13 + $0x50] sm:$0xff]
    %v1361 = vld [vmem:[#allocation13 + $0x58] sm:$0xff]
    %v1362 = vld [vmem:[#allocation13 + $0x60] sm:$0xff]
    %v1363 = vld [vmem:[#allocation13 + $0x68] sm:$0xff]
    %v1364 = vld [vmem:[#allocation13 + $0x70] sm:$0xff]
    %v1365 = vld [vmem:[#allocation13 + $0x78] sm:$0xff]
    %v1366 = vld [vmem:[#allocation13 + $0x80] sm:$0xff]
    %v1367 = vld [vmem:[#allocation13 + $0x88] sm:$0xff]
    %v1368 = vld [vmem:[#allocation13 + $0x90] sm:$0xff]
    %v1369 = vld [vmem:[#allocation13 + $0x98] sm:$0xff]
    %v1370 = vld [vmem:[#allocation13 + $0xa0] sm:$0xff]
    %v1371 = vld [vmem:[#allocation13 + $0xa8] sm:$0xff]
    %v1372 = vld [vmem:[#allocation13 + $0xb0] sm:$0xff]
    %v1373 = vld [vmem:[#allocation13 + $0xb8] sm:$0xff]
    %v1374 = vld [vmem:[#allocation13 + $0xc0] sm:$0xff]
    %v1375 = vld [vmem:[#allocation13 + $0xc8] sm:$0xff]
    %v1376 = vld [vmem:[#allocation13 + $0xd0] sm:$0xff]
    %v1377 = vld [vmem:[#allocation13 + $0xd8] sm:$0xff]
    %v1378 = vld [vmem:[#allocation13 + $0xe0] sm:$0xff]
    %v1379 = vld [vmem:[#allocation13 + $0xe8] sm:$0xff]
    %v1380 = vld [vmem:[#allocation13 + $0xf0] sm:$0xff]
    %v1381 = vld [vmem:[#allocation13 + $0xf8] sm:$0xff]
    %v1382 = vld [vmem:[#allocation13 + $0x100] sm:$0xff]
    %v1383 = vld [vmem:[#allocation13 + $0x108] sm:$0xff]
    %v1384 = vld [vmem:[#allocation13 + $0x110] sm:$0xff]
    %v1385 = vld [vmem:[#allocation13 + $0x118] sm:$0xff]
    %v1386 = vld [vmem:[#allocation13 + $0x120] sm:$0xff]
    %v1387 = vld [vmem:[#allocation13 + $0x128] sm:$0xff]
    %v1388 = vld [vmem:[#allocation13 + $0x130] sm:$0xff]
    %v1389 = vld [vmem:[#allocation13 + $0x138] sm:$0xff]
    %v1390 = vld [vmem:[#allocation13 + $0x140] sm:$0xff]
    %v1391 = vld [vmem:[#allocation13 + $0x148] sm:$0xff]
    %v1392 = vld [vmem:[#allocation13 + $0x150] sm:$0xff]
    %v1393 = vld [vmem:[#allocation13 + $0x158] sm:$0xff]
    %v1394 = vld [vmem:[#allocation13 + $0x160] sm:$0xff]
    %v1395 = vld [vmem:[#allocation13 + $0x168] sm:$0xff]
    %v1396 = vld [vmem:[#allocation13 + $0x170] sm:$0xff]
    %v1397 = vld [vmem:[#allocation13 + $0x178] sm:$0xff]
    %v1398 = vld [vmem:[#allocation13 + $0x180] sm:$0xff]
    %v1399 = vld [vmem:[#allocation13 + $0x188] sm:$0xff]
    %v1400 = vld [vmem:[#allocation13 + $0x190] sm:$0xff]
    %v1401 = vld [vmem:[#allocation13 + $0x198] sm:$0xff]
    %v1402 = vld [vmem:[#allocation13 + $0x1a0] sm:$0xff]
    %v1403 = vld [vmem:[#allocation13 + $0x1a8] sm:$0xff]
    %v1404 = vld [vmem:[#allocation13 + $0x1b0] sm:$0xff]
    %v1405 = vld [vmem:[#allocation13 + $0x1b8] sm:$0xff]
    %v1406 = vld [vmem:[#allocation13 + $0x1c0] sm:$0xff]
    %v1407 = vld [vmem:[#allocation13 + $0x1c8] sm:$0xff]
    %v1408 = vld [vmem:[#allocation13 + $0x1d0] sm:$0xff]
    %v1409 = vld [vmem:[#allocation13 + $0x1d8] sm:$0xff]
    %v1410 = vld [vmem:[#allocation13 + $0x1e0] sm:$0xff]
    %v1411 = vld [vmem:[#allocation13 + $0x1e8] sm:$0xff]
    %v1412 = vld [vmem:[#allocation13 + $0x1f0] sm:$0xff]
    %v1413 = vld [vmem:[#allocation13 + $0x1f8] sm:$0xff]
    %v1414 = vld [vmem:[%s11] sm:$0xf]
    %v1416 = vlaneseq
    %v1417 = vshrl.u32 %v1416, 7
    %v1418 = vsub.s32 0, %v1417
    %v1419 = vrot.slane %v1414, %v1418
    %v1420 = vlaneseq
    %v1421 = vshrl.u32 %v1420, 7
    %v1422 = vsub.s32 1, %v1421
    %v1423 = vrot.slane %v1414, %v1422
    %v1424 = vlaneseq
    %v1425 = vshrl.u32 %v1424, 7
    %v1426 = vsub.s32 2, %v1425
    %v1427 = vrot.slane %v1414, %v1426
    %v1428 = vlaneseq
    %v1429 = vshrl.u32 %v1428, 7
    %v1430 = vsub.s32 3, %v1429
    %v1431 = vrot.slane %v1414, %v1430
    %v1500 = vunpack.c.l.b16 %v1350
    %v1501 = vunpack.c.h.b16 %v1350
    %v1502 = vunpack.c.l.b16 %v1351
    %v1503 = vunpack.c.h.b16 %v1351
    %v1504 = vunpack.c.l.b16 %v1352
    %v1505 = vunpack.c.h.b16 %v1352
    %v1506 = vunpack.c.l.b16 %v1353
    %v1507 = vunpack.c.h.b16 %v1353
    %v1508 = vunpack.c.l.b16 %v1354
    %v1509 = vunpack.c.h.b16 %v1354
    %v1510 = vunpack.c.l.b16 %v1355
    %v1511 = vunpack.c.h.b16 %v1355
    %v1512 = vunpack.c.l.b16 %v1356
    %v1513 = vunpack.c.h.b16 %v1356
    %v1514 = vunpack.c.l.b16 %v1357
    %v1515 = vunpack.c.h.b16 %v1357
    %v1516 = vunpack.c.l.b16 %v1358
    %v1517 = vunpack.c.h.b16 %v1358
    %v1518 = vunpack.c.l.b16 %v1359
    %v1519 = vunpack.c.h.b16 %v1359
    %v1520 = vunpack.c.l.b16 %v1360
    %v1521 = vunpack.c.h.b16 %v1360
    %v1522 = vunpack.c.l.b16 %v1361
    %v1523 = vunpack.c.h.b16 %v1361
    %v1524 = vunpack.c.l.b16 %v1362
    %v1525 = vunpack.c.h.b16 %v1362
    %v1526 = vunpack.c.l.b16 %v1363
    %v1527 = vunpack.c.h.b16 %v1363
    %v1528 = vunpack.c.l.b16 %v1364
    %v1529 = vunpack.c.h.b16 %v1364
    %v1530 = vunpack.c.l.b16 %v1365
    %v1531 = vunpack.c.h.b16 %v1365
    %v1532 = vunpack.c.l.b16 %v1366
    %v1533 = vunpack.c.h.b16 %v1366
    %v1534 = vunpack.c.l.b16 %v1367
    %v1535 = vunpack.c.h.b16 %v1367
    %v1536 = vunpack.c.l.b16 %v1368
    %v1537 = vunpack.c.h.b16 %v1368
    %v1538 = vunpack.c.l.b16 %v1369
    %v1539 = vunpack.c.h.b16 %v1369
    %v1540 = vunpack.c.l.b16 %v1370
    %v1541 = vunpack.c.h.b16 %v1370
    %v1542 = vunpack.c.l.b16 %v1371
    %v1543 = vunpack.c.h.b16 %v1371
    %v1544 = vunpack.c.l.b16 %v1372
    %v1545 = vunpack.c.h.b16 %v1372
    %v1546 = vunpack.c.l.b16 %v1373
    %v1547 = vunpack.c.h.b16 %v1373
    %v1548 = vunpack.c.l.b16 %v1374
    %v1549 = vunpack.c.h.b16 %v1374
    %v1550 = vunpack.c.l.b16 %v1375
    %v1551 = vunpack.c.h.b16 %v1375
    %v1552 = vunpack.c.l.b16 %v1376
    %v1553 = vunpack.c.h.b16 %v1376
    %v1554 = vunpack.c.l.b16 %v1377
    %v1555 = vunpack.c.h.b16 %v1377
    %v1556 = vunpack.c.l.b16 %v1378
    %v1557 = vunpack.c.h.b16 %v1378
    %v1558 = vunpack.c.l.b16 %v1379
    %v1559 = vunpack.c.h.b16 %v1379
    %v1560 = vunpack.c.l.b16 %v1380
    %v1561 = vunpack.c.h.b16 %v1380
    %v1562 = vunpack.c.l.b16 %v1381
    %v1563 = vunpack.c.h.b16 %v1381
    %v1564 = vunpack.c.l.b16 %v1382
    %v1565 = vunpack.c.h.b16 %v1382
    %v1566 = vunpack.c.l.b16 %v1383
    %v1567 = vunpack.c.h.b16 %v1383
    %v1568 = vunpack.c.l.b16 %v1384
    %v1569 = vunpack.c.h.b16 %v1384
    %v1570 = vunpack.c.l.b16 %v1385
    %v1571 = vunpack.c.h.b16 %v1385
    %v1572 = vunpack.c.l.b16 %v1386
    %v1573 = vunpack.c.h.b16 %v1386
    %v1574 = vunpack.c.l.b16 %v1387
    %v1575 = vunpack.c.h.b16 %v1387
    %v1576 = vunpack.c.l.b16 %v1388
    %v1577 = vunpack.c.h.b16 %v1388
    %v1578 = vunpack.c.l.b16 %v1389
    %v1579 = vunpack.c.h.b16 %v1389
    %v1580 = vunpack.c.l.b16 %v1390
    %v1581 = vunpack.c.h.b16 %v1390
    %v1582 = vunpack.c.l.b16 %v1391
    %v1583 = vunpack.c.h.b16 %v1391
    %v1584 = vunpack.c.l.b16 %v1392
    %v1585 = vunpack.c.h.b16 %v1392
    %v1586 = vunpack.c.l.b16 %v1393
    %v1587 = vunpack.c.h.b16 %v1393
    %v1588 = vunpack.c.l.b16 %v1394
    %v1589 = vunpack.c.h.b16 %v1394
    %v1590 = vunpack.c.l.b16 %v1395
    %v1591 = vunpack.c.h.b16 %v1395
    %v1592 = vunpack.c.l.b16 %v1396
    %v1593 = vunpack.c.h.b16 %v1396
    %v1594 = vunpack.c.l.b16 %v1397
    %v1595 = vunpack.c.h.b16 %v1397
    %v1596 = vunpack.c.l.b16 %v1398
    %v1597 = vunpack.c.h.b16 %v1398
    %v1598 = vunpack.c.l.b16 %v1399
    %v1599 = vunpack.c.h.b16 %v1399
    %v1600 = vunpack.c.l.b16 %v1400
    %v1601 = vunpack.c.h.b16 %v1400
    %v1602 = vunpack.c.l.b16 %v1401
    %v1603 = vunpack.c.h.b16 %v1401
    %v1604 = vunpack.c.l.b16 %v1402
    %v1605 = vunpack.c.h.b16 %v1402
    %v1606 = vunpack.c.l.b16 %v1403
    %v1607 = vunpack.c.h.b16 %v1403
    %v1608 = vunpack.c.l.b16 %v1404
    %v1609 = vunpack.c.h.b16 %v1404
    %v1610 = vunpack.c.l.b16 %v1405
    %v1611 = vunpack.c.h.b16 %v1405
    %v1612 = vunpack.c.l.b16 %v1406
    %v1613 = vunpack.c.h.b16 %v1406
    %v1614 = vunpack.c.l.b16 %v1407
    %v1615 = vunpack.c.h.b16 %v1407
    %v1616 = vunpack.c.l.b16 %v1408
    %v1617 = vunpack.c.h.b16 %v1408
    %v1618 = vunpack.c.l.b16 %v1409
    %v1619 = vunpack.c.h.b16 %v1409
    %v1620 = vunpack.c.l.b16 %v1410
    %v1621 = vunpack.c.h.b16 %v1410
    %v1622 = vunpack.c.l.b16 %v1411
    %v1623 = vunpack.c.h.b16 %v1411
    %v1624 = vunpack.c.l.b16 %v1412
    %v1625 = vunpack.c.h.b16 %v1412
    %v1626 = vunpack.c.l.b16 %v1413
    %v1627 = vunpack.c.h.b16 %v1413
    %v1628 = vpack.c.b16 %v1504, %v1500
    %v1629 = vpack.c.b16 %v1505, %v1501
    %v1630 = vpack.c.b16 %v1506, %v1502
    %v1631 = vpack.c.b16 %v1507, %v1503
    %v1632 = vpack.c.b16 %v1512, %v1508
    %v1633 = vpack.c.b16 %v1513, %v1509
    %v1634 = vpack.c.b16 %v1514, %v1510
    %v1635 = vpack.c.b16 %v1515, %v1511
    %v1636 = vpack.c.b16 %v1520, %v1516
    %v1637 = vpack.c.b16 %v1521, %v1517
    %v1638 = vpack.c.b16 %v1522, %v1518
    %v1639 = vpack.c.b16 %v1523, %v1519
    %v1640 = vpack.c.b16 %v1528, %v1524
    %v1641 = vpack.c.b16 %v1529, %v1525
    %v1642 = vpack.c.b16 %v1530, %v1526
    %v1643 = vpack.c.b16 %v1531, %v1527
    %v1644 = vpack.c.b16 %v1536, %v1532
    %v1645 = vpack.c.b16 %v1537, %v1533
    %v1646 = vpack.c.b16 %v1538, %v1534
    %v1647 = vpack.c.b16 %v1539, %v1535
    %v1648 = vpack.c.b16 %v1544, %v1540
    %v1649 = vpack.c.b16 %v1545, %v1541
    %v1650 = vpack.c.b16 %v1546, %v1542
    %v1651 = vpack.c.b16 %v1547, %v1543
    %v1652 = vpack.c.b16 %v1552, %v1548
    %v1653 = vpack.c.b16 %v1553, %v1549
    %v1654 = vpack.c.b16 %v1554, %v1550
    %v1655 = vpack.c.b16 %v1555, %v1551
    %v1656 = vpack.c.b16 %v1560, %v1556
    %v1657 = vpack.c.b16 %v1561, %v1557
    %v1658 = vpack.c.b16 %v1562, %v1558
    %v1659 = vpack.c.b16 %v1563, %v1559
    %v1660 = vpack.c.b16 %v1568, %v1564
    %v1661 = vpack.c.b16 %v1569, %v1565
    %v1662 = vpack.c.b16 %v1570, %v1566
    %v1663 = vpack.c.b16 %v1571, %v1567
    %v1664 = vpack.c.b16 %v1576, %v1572
    %v1665 = vpack.c.b16 %v1577, %v1573
    %v1666 = vpack.c.b16 %v1578, %v1574
    %v1667 = vpack.c.b16 %v1579, %v1575
    %v1668 = vpack.c.b16 %v1584, %v1580
    %v1669 = vpack.c.b16 %v1585, %v1581
    %v1670 = vpack.c.b16 %v1586, %v1582
    %v1671 = vpack.c.b16 %v1587, %v1583
    %v1672 = vpack.c.b16 %v1592, %v1588
    %v1673 = vpack.c.b16 %v1593, %v1589
    %v1674 = vpack.c.b16 %v1594, %v1590
    %v1675 = vpack.c.b16 %v1595, %v1591
    %v1676 = vpack.c.b16 %v1600, %v1596
    %v1677 = vpack.c.b16 %v1601, %v1597
    %v1678 = vpack.c.b16 %v1602, %v1598
    %v1679 = vpack.c.b16 %v1603, %v1599
    %v1680 = vpack.c.b16 %v1608, %v1604
    %v1681 = vpack.c.b16 %v1609, %v1605
    %v1682 = vpack.c.b16 %v1610, %v1606
    %v1683 = vpack.c.b16 %v1611, %v1607
    %v1684 = vpack.c.b16 %v1616, %v1612
    %v1685 = vpack.c.b16 %v1617, %v1613
    %v1686 = vpack.c.b16 %v1618, %v1614
    %v1687 = vpack.c.b16 %v1619, %v1615
    %v1688 = vpack.c.b16 %v1624, %v1620
    %v1689 = vpack.c.b16 %v1625, %v1621
    %v1690 = vpack.c.b16 %v1626, %v1622
    %v1691 = vpack.c.b16 %v1627, %v1623
    %1756 = vmatprep.subr.bf16.mxu0 %v1629
    %1757 = vmatpush1.bf16.msra.mxu0 %v1628
    %1758 = vmatprep.subr.bf16.mxu0 %v1633
    %1759 = vmatpush1.bf16.msra.mxu0 %v1632
    %1760 = vmatprep.subr.bf16.mxu0 %v1637
    %1761 = vmatpush1.bf16.msra.mxu0 %v1636
    %1762 = vmatprep.subr.bf16.mxu0 %v1641
    %1763 = vmatpush1.bf16.msra.mxu0 %v1640
    %1764 = vmatprep.subr.bf16.mxu0 %v1645
    %1765 = vmatpush1.bf16.msra.mxu0 %v1644
    %1766 = vmatprep.subr.bf16.mxu0 %v1649
    %1767 = vmatpush1.bf16.msra.mxu0 %v1648
    %1768 = vmatprep.subr.bf16.mxu0 %v1653
    %1769 = vmatpush1.bf16.msra.mxu0 %v1652
    %1770 = vmatprep.subr.bf16.mxu0 %v1657
    %1771 = vmatpush1.bf16.msra.mxu0 %v1656
    %1772 = vmatprep.subr.bf16.mxu0 %v1661
    %1773 = vmatpush1.bf16.msra.mxu0 %v1660
    %1774 = vmatprep.subr.bf16.mxu0 %v1665
    %1775 = vmatpush1.bf16.msra.mxu0 %v1664
    %1776 = vmatprep.subr.bf16.mxu0 %v1669
    %1777 = vmatpush1.bf16.msra.mxu0 %v1668
    %1778 = vmatprep.subr.bf16.mxu0 %v1673
    %1779 = vmatpush1.bf16.msra.mxu0 %v1672
    %1780 = vmatprep.subr.bf16.mxu0 %v1677
    %1781 = vmatpush1.bf16.msra.mxu0 %v1676
    %1782 = vmatprep.subr.bf16.mxu0 %v1681
    %1783 = vmatpush1.bf16.msra.mxu0 %v1680
    %1784 = vmatprep.subr.bf16.mxu0 %v1685
    %1785 = vmatpush1.bf16.msra.mxu0 %v1684
    %1786 = vmatprep.subr.bf16.mxu0 %v1689
    %1787 = vmatpush1.bf16.msra.mxu0 %v1688
    %1788 = vmatprep.mubr.bf16.mxu0 %v1349
    %1789 = vmatmul.mubr.bf16.gmra.mrb[0].mxu0 %v1348
    %v1790 = vpop.f32.mrb[0].mxu0
    %v1791 = vadd.f32 %v1419, %v1790
    %v1792 = vpop.f32.mrb[0].mxu0
    %v1793 = vadd.f32 %v1423, %v1792
    %v1794 = vpop.f32.mrb[0].mxu0
    %v1795 = vpop.f32.mrb[0].mxu0
    %1796 = vdwg.mxu0
    %1797 = vmatprep.subr.bf16.mxu0 %v1631
    %1798 = vmatpush1.bf16.msra.mxu0 %v1630
    %1799 = vmatprep.subr.bf16.mxu0 %v1635
    %1800 = vmatpush1.bf16.msra.mxu0 %v1634
    %1801 = vmatprep.subr.bf16.mxu0 %v1639
    %1802 = vmatpush1.bf16.msra.mxu0 %v1638
    %1803 = vmatprep.subr.bf16.mxu0 %v1643
    %1804 = vmatpush1.bf16.msra.mxu0 %v1642
    %1805 = vmatprep.subr.bf16.mxu0 %v1647
    %1806 = vmatpush1.bf16.msra.mxu0 %v1646
    %1807 = vmatprep.subr.bf16.mxu0 %v1651
    %1808 = vmatpush1.bf16.msra.mxu0 %v1650
    %1809 = vmatprep.subr.bf16.mxu0 %v1655
    %1810 = vmatpush1.bf16.msra.mxu0 %v1654
    %1811 = vmatprep.subr.bf16.mxu0 %v1659
    %1812 = vmatpush1.bf16.msra.mxu0 %v1658
    %1813 = vmatprep.subr.bf16.mxu0 %v1663
    %1814 = vmatpush1.bf16.msra.mxu0 %v1662
    %1815 = vmatprep.subr.bf16.mxu0 %v1667
    %1816 = vmatpush1.bf16.msra.mxu0 %v1666
    %1817 = vmatprep.subr.bf16.mxu0 %v1671
    %1818 = vmatpush1.bf16.msra.mxu0 %v1670
    %1819 = vmatprep.subr.bf16.mxu0 %v1675
    %1820 = vmatpush1.bf16.msra.mxu0 %v1674
    %1821 = vmatprep.subr.bf16.mxu0 %v1679
    %1822 = vmatpush1.bf16.msra.mxu0 %v1678
    %1823 = vmatprep.subr.bf16.mxu0 %v1683
    %1824 = vmatpush1.bf16.msra.mxu0 %v1682
    %1825 = vmatprep.subr.bf16.mxu0 %v1687
    %1826 = vmatpush1.bf16.msra.mxu0 %v1686
    %1827 = vmatprep.subr.bf16.mxu0 %v1691
    %1828 = vmatpush1.bf16.msra.mxu0 %v1690
    %1829 = vmatprep.mubr.bf16.mxu0 %v1349
    %1830 = vmatmul.mubr.bf16.gmra.mrb[0].mxu0 %v1348
    %v1831 = vpop.f32.mrb[0].mxu0
    %v1832 = vadd.f32 %v1427, %v1831
    %v1833 = vpop.f32.mrb[0].mxu0
    %v1834 = vadd.f32 %v1431, %v1833
    %v1835 = vpop.f32.mrb[0].mxu0
    %v1836 = vpop.f32.mrb[0].mxu0
    %1837 = vdwg.mxu0
    %v1838 = vmax.f32 %v1791, 0.0
    %v1839 = vmax.f32 %v1793, 0.0
    %v1840 = vmax.f32 %v1832, 0.0
    %v1841 = vmax.f32 %v1834, 0.0
    %v1842 = vpack.c.bf16 %v1838, %v1838
    %v1843 = vpack.c.bf16 %v1839, %v1839
    %v1844 = vpack.c.bf16 %v1840, %v1840
    %v1845 = vpack.c.bf16 %v1841, %v1841
    %v1846 = vld [vmem:[#allocation14] sm:$0xf]
    %v1847 = vld [vmem:[#allocation14 + $0x4] sm:$0xf]
    %v1848 = vld [vmem:[#allocation14 + $0x8] sm:$0xf]
    %v1849 = vld [vmem:[#allocation14 + $0xc] sm:$0xf]
    %v1850 = vld [vmem:[#allocation14 + $0x10] sm:$0xf]
    %v1851 = vld [vmem:[#allocation14 + $0x14] sm:$0xf]
    %v1852 = vld [vmem:[#allocation14 + $0x18] sm:$0xf]
    %v1853 = vld [vmem:[#allocation14 + $0x1c] sm:$0xf]
    %v1854 = vld [vmem:[#allocation14 + $0x20] sm:$0xf]
    %v1855 = vld [vmem:[#allocation14 + $0x24] sm:$0xf]
    %v1856 = vld [vmem:[#allocation14 + $0x28] sm:$0xf]
    %v1857 = vld [vmem:[#allocation14 + $0x2c] sm:$0xf]
    %v1858 = vld [vmem:[#allocation14 + $0x30] sm:$0xf]
    %v1859 = vld [vmem:[#allocation14 + $0x34] sm:$0xf]
    %v1860 = vld [vmem:[#allocation14 + $0x38] sm:$0xf]
    %v1861 = vld [vmem:[#allocation14 + $0x3c] sm:$0xf]
    %v1862 = vld [vmem:[#allocation14 + $0x40] sm:$0xf]
    %v1863 = vld [vmem:[#allocation14 + $0x44] sm:$0xf]
    %v1864 = vld [vmem:[#allocation14 + $0x48] sm:$0xf]
    %v1865 = vld [vmem:[#allocation14 + $0x4c] sm:$0xf]
    %v1866 = vld [vmem:[#allocation14 + $0x50] sm:$0xf]
    %v1867 = vld [vmem:[#allocation14 + $0x54] sm:$0xf]
    %v1868 = vld [vmem:[#allocation14 + $0x58] sm:$0xf]
    %v1869 = vld [vmem:[#allocation14 + $0x5c] sm:$0xf]
    %v1870 = vld [vmem:[#allocation14 + $0x60] sm:$0xf]
    %v1871 = vld [vmem:[#allocation14 + $0x64] sm:$0xf]
    %v1872 = vld [vmem:[#allocation14 + $0x68] sm:$0xf]
    %v1873 = vld [vmem:[#allocation14 + $0x6c] sm:$0xf]
    %v1874 = vld [vmem:[#allocation14 + $0x70] sm:$0xf]
    %v1875 = vld [vmem:[#allocation14 + $0x74] sm:$0xf]
    %v1876 = vld [vmem:[#allocation14 + $0x78] sm:$0xf]
    %v1877 = vld [vmem:[#allocation14 + $0x7c] sm:$0xf]
    %v1878 = vld [vmem:[#allocation14 + $0x80] sm:$0xf]
    %v1879 = vld [vmem:[#allocation14 + $0x84] sm:$0xf]
    %v1880 = vld [vmem:[#allocation14 + $0x88] sm:$0xf]
    %v1881 = vld [vmem:[#allocation14 + $0x8c] sm:$0xf]
    %v1882 = vld [vmem:[#allocation14 + $0x90] sm:$0xf]
    %v1883 = vld [vmem:[#allocation14 + $0x94] sm:$0xf]
    %v1884 = vld [vmem:[#allocation14 + $0x98] sm:$0xf]
    %v1885 = vld [vmem:[#allocation14 + $0x9c] sm:$0xf]
    %v1886 = vld [vmem:[#allocation14 + $0xa0] sm:$0xf]
    %v1887 = vld [vmem:[#allocation14 + $0xa4] sm:$0xf]
    %v1888 = vld [vmem:[#allocation14 + $0xa8] sm:$0xf]
    %v1889 = vld [vmem:[#allocation14 + $0xac] sm:$0xf]
    %v1890 = vld [vmem:[#allocation14 + $0xb0] sm:$0xf]
    %v1891 = vld [vmem:[#allocation14 + $0xb4] sm:$0xf]
    %v1892 = vld [vmem:[#allocation14 + $0xb8] sm:$0xf]
    %v1893 = vld [vmem:[#allocation14 + $0xbc] sm:$0xf]
    %v1894 = vld [vmem:[#allocation14 + $0xc0] sm:$0xf]
    %v1895 = vld [vmem:[#allocation14 + $0xc4] sm:$0xf]
    %v1896 = vld [vmem:[#allocation14 + $0xc8] sm:$0xf]
    %v1897 = vld [vmem:[#allocation14 + $0xcc] sm:$0xf]
    %v1898 = vld [vmem:[#allocation14 + $0xd0] sm:$0xf]
    %v1899 = vld [vmem:[#allocation14 + $0xd4] sm:$0xf]
    %v1900 = vld [vmem:[#allocation14 + $0xd8] sm:$0xf]
    %v1901 = vld [vmem:[#allocation14 + $0xdc] sm:$0xf]
    %v1902 = vld [vmem:[#allocation14 + $0xe0] sm:$0xf]
    %v1903 = vld [vmem:[#allocation14 + $0xe4] sm:$0xf]
    %v1904 = vld [vmem:[#allocation14 + $0xe8] sm:$0xf]
    %v1905 = vld [vmem:[#allocation14 + $0xec] sm:$0xf]
    %v1906 = vld [vmem:[#allocation14 + $0xf0] sm:$0xf]
    %v1907 = vld [vmem:[#allocation14 + $0xf4] sm:$0xf]
    %v1908 = vld [vmem:[#allocation14 + $0xf8] sm:$0xf]
    %v1909 = vld [vmem:[#allocation14 + $0xfc] sm:$0xf]
    %v1910 = vld [vmem:[%s13] sm:$0x1]
    %v1912 = vlaneseq
    %v1913 = vshrl.u32 %v1912, 7
    %v1914 = vsub.s32 0, %v1913
    %v1915 = vrot.slane %v1910, %v1914
    %v1981 = vunpack.c.l.b16 %v1846
    %v1982 = vunpack.c.l.b16 %v1847
    %v1983 = vunpack.c.l.b16 %v1848
    %v1984 = vunpack.c.l.b16 %v1849
    %v1985 = vunpack.c.l.b16 %v1850
    %v1986 = vunpack.c.l.b16 %v1851
    %v1987 = vunpack.c.l.b16 %v1852
    %v1988 = vunpack.c.l.b16 %v1853
    %v1989 = vunpack.c.l.b16 %v1854
    %v1990 = vunpack.c.l.b16 %v1855
    %v1991 = vunpack.c.l.b16 %v1856
    %v1992 = vunpack.c.l.b16 %v1857
    %v1993 = vunpack.c.l.b16 %v1858
    %v1994 = vunpack.c.l.b16 %v1859
    %v1995 = vunpack.c.l.b16 %v1860
    %v1996 = vunpack.c.l.b16 %v1861
    %v1997 = vunpack.c.l.b16 %v1862
    %v1998 = vunpack.c.l.b16 %v1863
    %v1999 = vunpack.c.l.b16 %v1864
    %v2000 = vunpack.c.l.b16 %v1865
    %v2001 = vunpack.c.l.b16 %v1866
    %v2002 = vunpack.c.l.b16 %v1867
    %v2003 = vunpack.c.l.b16 %v1868
    %v2004 = vunpack.c.l.b16 %v1869
    %v2005 = vunpack.c.l.b16 %v1870
    %v2006 = vunpack.c.l.b16 %v1871
    %v2007 = vunpack.c.l.b16 %v1872
    %v2008 = vunpack.c.l.b16 %v1873
    %v2009 = vunpack.c.l.b16 %v1874
    %v2010 = vunpack.c.l.b16 %v1875
    %v2011 = vunpack.c.l.b16 %v1876
    %v2012 = vunpack.c.l.b16 %v1877
    %v2013 = vunpack.c.l.b16 %v1878
    %v2014 = vunpack.c.l.b16 %v1879
    %v2015 = vunpack.c.l.b16 %v1880
    %v2016 = vunpack.c.l.b16 %v1881
    %v2017 = vunpack.c.l.b16 %v1882
    %v2018 = vunpack.c.l.b16 %v1883
    %v2019 = vunpack.c.l.b16 %v1884
    %v2020 = vunpack.c.l.b16 %v1885
    %v2021 = vunpack.c.l.b16 %v1886
    %v2022 = vunpack.c.l.b16 %v1887
    %v2023 = vunpack.c.l.b16 %v1888
    %v2024 = vunpack.c.l.b16 %v1889
    %v2025 = vunpack.c.l.b16 %v1890
    %v2026 = vunpack.c.l.b16 %v1891
    %v2027 = vunpack.c.l.b16 %v1892
    %v2028 = vunpack.c.l.b16 %v1893
    %v2029 = vunpack.c.l.b16 %v1894
    %v2030 = vunpack.c.l.b16 %v1895
    %v2031 = vunpack.c.l.b16 %v1896
    %v2032 = vunpack.c.l.b16 %v1897
    %v2033 = vunpack.c.l.b16 %v1898
    %v2034 = vunpack.c.l.b16 %v1899
    %v2035 = vunpack.c.l.b16 %v1900
    %v2036 = vunpack.c.l.b16 %v1901
    %v2037 = vunpack.c.l.b16 %v1902
    %v2038 = vunpack.c.l.b16 %v1903
    %v2039 = vunpack.c.l.b16 %v1904
    %v2040 = vunpack.c.l.b16 %v1905
    %v2041 = vunpack.c.l.b16 %v1906
    %v2042 = vunpack.c.l.b16 %v1907
    %v2043 = vunpack.c.l.b16 %v1908
    %v2044 = vunpack.c.l.b16 %v1909
    %v2045 = vpack.c.b16 %v1982, %v1981
    %v2046 = vpack.c.b16 %v1984, %v1983
    %v2047 = vpack.c.b16 %v1986, %v1985
    %v2048 = vpack.c.b16 %v1988, %v1987
    %v2049 = vpack.c.b16 %v1990, %v1989
    %v2050 = vpack.c.b16 %v1992, %v1991
    %v2051 = vpack.c.b16 %v1994, %v1993
    %v2052 = vpack.c.b16 %v1996, %v1995
    %v2053 = vpack.c.b16 %v1998, %v1997
    %v2054 = vpack.c.b16 %v2000, %v1999
    %v2055 = vpack.c.b16 %v2002, %v2001
    %v2056 = vpack.c.b16 %v2004, %v2003
    %v2057 = vpack.c.b16 %v2006, %v2005
    %v2058 = vpack.c.b16 %v2008, %v2007
    %v2059 = vpack.c.b16 %v2010, %v2009
    %v2060 = vpack.c.b16 %v2012, %v2011
    %v2061 = vpack.c.b16 %v2014, %v2013
    %v2062 = vpack.c.b16 %v2016, %v2015
    %v2063 = vpack.c.b16 %v2018, %v2017
    %v2064 = vpack.c.b16 %v2020, %v2019
    %v2065 = vpack.c.b16 %v2022, %v2021
    %v2066 = vpack.c.b16 %v2024, %v2023
    %v2067 = vpack.c.b16 %v2026, %v2025
    %v2068 = vpack.c.b16 %v2028, %v2027
    %v2069 = vpack.c.b16 %v2030, %v2029
    %v2070 = vpack.c.b16 %v2032, %v2031
    %v2071 = vpack.c.b16 %v2034, %v2033
    %v2072 = vpack.c.b16 %v2036, %v2035
    %v2073 = vpack.c.b16 %v2038, %v2037
    %v2074 = vpack.c.b16 %v2040, %v2039
    %v2075 = vpack.c.b16 %v2042, %v2041
    %v2076 = vpack.c.b16 %v2044, %v2043
    %2109 = vmatprep.subr.bf16.mxu0 0
    %2110 = vmatpush1.bf16.msra.mxu0 %v2045
    %2111 = vmatprep.subr.bf16.mxu0 0
    %2112 = vmatpush1.bf16.msra.mxu0 %v2046
    %2113 = vmatprep.subr.bf16.mxu0 0
    %2114 = vmatpush1.bf16.msra.mxu0 %v2047
    %2115 = vmatprep.subr.bf16.mxu0 0
    %2116 = vmatpush1.bf16.msra.mxu0 %v2048
    %2117 = vmatprep.subr.bf16.mxu0 0
    %2118 = vmatpush1.bf16.msra.mxu0 %v2049
    %2119 = vmatprep.subr.bf16.mxu0 0
    %2120 = vmatpush1.bf16.msra.mxu0 %v2050
    %2121 = vmatprep.subr.bf16.mxu0 0
    %2122 = vmatpush1.bf16.msra.mxu0 %v2051
    %2123 = vmatprep.subr.bf16.mxu0 0
    %2124 = vmatpush1.bf16.msra.mxu0 %v2052
    %2125 = vmatprep.subr.bf16.mxu0 0
    %2126 = vmatpush1.bf16.msra.mxu0 %v2053
    %2127 = vmatprep.subr.bf16.mxu0 0
    %2128 = vmatpush1.bf16.msra.mxu0 %v2054
    %2129 = vmatprep.subr.bf16.mxu0 0
    %2130 = vmatpush1.bf16.msra.mxu0 %v2055
    %2131 = vmatprep.subr.bf16.mxu0 0
    %2132 = vmatpush1.bf16.msra.mxu0 %v2056
    %2133 = vmatprep.subr.bf16.mxu0 0
    %2134 = vmatpush1.bf16.msra.mxu0 %v2057
    %2135 = vmatprep.subr.bf16.mxu0 0
    %2136 = vmatpush1.bf16.msra.mxu0 %v2058
    %2137 = vmatprep.subr.bf16.mxu0 0
    %2138 = vmatpush1.bf16.msra.mxu0 %v2059
    %2139 = vmatprep.subr.bf16.mxu0 0
    %2140 = vmatpush1.bf16.msra.mxu0 %v2060
    %2141 = vmatprep.mubr.bf16.mxu0 %v1843
    %2142 = vmatmul.mubr.bf16.gmra.mrb[0].mxu0 %v1842
    %v2143 = vpop.f32.mrb[0].mxu0
    %v2144 = vadd.f32 %v1915, %v2143
    %v2145 = vpop.f32.mrb[0].mxu0
    %v2146 = vpop.f32.mrb[0].mxu0
    %v2147 = vpop.f32.mrb[0].mxu0
    %2148 = vdwg.mxu0
    %2149 = vmatprep.subr.bf16.mxu0 0
    %2150 = vmatpush1.bf16.msra.mxu0 %v2061
    %2151 = vmatprep.subr.bf16.mxu0 0
    %2152 = vmatpush1.bf16.msra.mxu0 %v2062
    %2153 = vmatprep.subr.bf16.mxu0 0
    %2154 = vmatpush1.bf16.msra.mxu0 %v2063
    %2155 = vmatprep.subr.bf16.mxu0 0
    %2156 = vmatpush1.bf16.msra.mxu0 %v2064
    %2157 = vmatprep.subr.bf16.mxu0 0
    %2158 = vmatpush1.bf16.msra.mxu0 %v2065
    %2159 = vmatprep.subr.bf16.mxu0 0
    %2160 = vmatpush1.bf16.msra.mxu0 %v2066
    %2161 = vmatprep.subr.bf16.mxu0 0
    %2162 = vmatpush1.bf16.msra.mxu0 %v2067
    %2163 = vmatprep.subr.bf16.mxu0 0
    %2164 = vmatpush1.bf16.msra.mxu0 %v2068
    %2165 = vmatprep.subr.bf16.mxu0 0
    %2166 = vmatpush1.bf16.msra.mxu0 %v2069
    %2167 = vmatprep.subr.bf16.mxu0 0
    %2168 = vmatpush1.bf16.msra.mxu0 %v2070
    %2169 = vmatprep.subr.bf16.mxu0 0
    %2170 = vmatpush1.bf16.msra.mxu0 %v2071
    %2171 = vmatprep.subr.bf16.mxu0 0
    %2172 = vmatpush1.bf16.msra.mxu0 %v2072
    %2173 = vmatprep.subr.bf16.mxu0 0
    %2174 = vmatpush1.bf16.msra.mxu0 %v2073
    %2175 = vmatprep.subr.bf16.mxu0 0
    %2176 = vmatpush1.bf16.msra.mxu0 %v2074
    %2177 = vmatprep.subr.bf16.mxu0 0
    %2178 = vmatpush1.bf16.msra.mxu0 %v2075
    %2179 = vmatprep.subr.bf16.mxu0 0
    %2180 = vmatpush1.bf16.msra.mxu0 %v2076
    %2181 = vmatprep.mubr.bf16.mxu0 %v1845
    %2182 = vmatmul.mubr.bf16.gmra.mrb[0].mxu0 %v1844
    %v2183 = vpop.f32.mrb[0].mxu0
    %v2184 = vadd.f32 %v2144, %v2183
    %v2185 = vpop.f32.mrb[0].mxu0
    %v2186 = vpop.f32.mrb[0].mxu0
    %v2187 = vpop.f32.mrb[0].mxu0
    %2188 = vdwg.mxu0
    %v2189 = vxor.u32 %v2184, 2147483648
    %v2190 = vmul.f32 %v2189, 1.442695
    %v2191 = vpow.pop %v2190
    %v2192 = vadd.f32 %v2191, 1.0
    %v2193 = vrcp.pop %v2192
    %v2194 = vmul.f32 1.0, %v2193
    %2195 = vst [vmem:[#allocation16] sm:$0xff] %v2194
    %2196 = vst [vmem:[#allocation17] sm:$0xff] %v1184
    %2197 = vst [vmem:[#allocation17 + $0x8] sm:$0xff] %v1186
    // Predicated region
    $region90: #{tpu_custom_call.1} parent=1 // pred_check
      _
    $region91: #{tpu_custom_call.1} parent=1 // pred_check_branch
      %2199 = sbr.rel (0) target = $region93
    $region92: #{tpu_custom_call.1} parent=1 // pred_region
      %s2201 = ssub.s32 128, 128
      %2202 = vsyncadd [#allocation4], %s2201
      %s2204 = sshll.u32 [#allocation16], 4
      %s2205 = int_to_ptr.vmem [resolvable:$true] %s2204
      %2207 = dma.vmem_to_hbm [thread:$0]  %s2205, 128, %s14, [#allocation4]
    $region93: #{tpu_custom_call.1} parent=1 // pred_fallthru
      _
    // Predicated region
    $region94: #{tpu_custom_call.1} parent=1 // pred_check
      _
    $region95: #{tpu_custom_call.1} parent=1 // pred_check_branch
      %2209 = sbr.rel (0) target = $region97
    $region96: #{tpu_custom_call.1} parent=1 // pred_region
      %s2211 = ssub.s32 256, 256
      %2212 = vsyncadd [#allocation18], %s2211
      %s2214 = sshll.u32 [#allocation17], 4
      %s2215 = int_to_ptr.vmem [resolvable:$true] %s2214
      %2217 = dma.vmem_to_hbm [thread:$0]  %s2215, 256, %s15, [#allocation18]
    $region97: #{tpu_custom_call.1} parent=1 // pred_fallthru
      _
    // Predicated region
    $region98: #{tpu_custom_call.1} parent=1 // pred_check
      _
    $region99: #{tpu_custom_call.1} parent=1 // pred_check_branch
      %2219 = sbr.rel (0) target = $region101
    $region100: #{tpu_custom_call.1} parent=1 // pred_region
      %2220 = dma.done [#allocation4], 128
    $region101: #{tpu_custom_call.1} parent=1 // pred_fallthru
      _
    // Predicated region
    $region102: #{tpu_custom_call.1} parent=1 // pred_check
      _
    $region103: #{tpu_custom_call.1} parent=1 // pred_check_branch
      %2222 = sbr.rel (0) target = $region105
    $region104: #{tpu_custom_call.1} parent=1 // pred_region
      %2223 = dma.done [#allocation18], 256
    $region105: #{tpu_custom_call.1} parent=1 // pred_fallthru
      _
    %2224 = vsyncpa [#allocation3], 1
    %2225 = vsyncpa [#allocation6], 1
    %2226 = vsyncpa [#allocation9], 1
    %2227 = vsyncpa [#allocation12], 1
    %2228 = vsyncpa [#allocation15], 1
    %2229 = vsyncpa [#allocation4], 1
    %2230 = vsyncpa [#allocation18], 1

</llo_original>
